<compile_context>
chip_gen: v5e
topology: v5e:2x2
jax: 0.10.0
libtpu: 0.0.40
codegen_flags: <defaults>
</compile_context>

<pallas_src>
from functools import partial

import jax
import jax.numpy as jnp
from jax.experimental import pallas as pl
from jax.experimental.pallas import tpu as pltpu


_ROW_TILE_TARGET = 512          # ~85% of HBM roofline per measured sweep
_VMEM_LIMIT = 32 * 1024 * 1024  # safe on v5e/v6e (128 MiB) and v7x (64 MiB)


# -----------------------------------------------------------------------------
# Pallas kernels
# -----------------------------------------------------------------------------
def _fused_stem_head_kernel(x_ref, w_bb_ref, w_head_ref, feat_ref, head_ref):
    """Per-voxel: feat = relu(x @ Wbb); head = sigmoid(feat @ Whead).
    The Cf-wide intermediate stays in vregs (never hits HBM between the two
    matmuls)."""
    feat = jnp.dot(x_ref[...], w_bb_ref[...],
                   preferred_element_type=jnp.float32)
    feat = jnp.maximum(feat, 0.0)                       # ReLU epilogue in f32
    feat_ref[...] = feat.astype(feat_ref.dtype)
    head = jnp.dot(feat.astype(w_head_ref.dtype), w_head_ref[...],
                   preferred_element_type=jnp.float32)
    head_ref[...] = jax.nn.sigmoid(head).astype(head_ref.dtype)


def _proj_sigmoid_kernel(x_ref, w_ref, o_ref):
    """Per-voxel 1x1x1 conv (no bias) fused with sigmoid out_transform."""
    acc = jnp.dot(x_ref[...], w_ref[...], preferred_element_type=jnp.float32)
    o_ref[...] = jax.nn.sigmoid(acc).astype(o_ref.dtype)


# -----------------------------------------------------------------------------
# Pallas wrappers (row tiling / padding shared logic)
# -----------------------------------------------------------------------------
def _row_tile_and_pad(x_flat):
    """Pick row tile; pad rows to a multiple of it (no whole-array fallback
    for large non-aligned R)."""
    R = x_flat.shape[0]
    tile_r = R if R <= _ROW_TILE_TARGET else _ROW_TILE_TARGET
    r_pad = -(-R // tile_r) * tile_r
    if r_pad != R:
        x_flat = jnp.pad(x_flat, ((0, r_pad - R), (0, 0)))
    return x_flat, tile_r, R, r_pad


def fused_stem_head(x_flat, w_bb, w_head):
    """x_flat: (R, Cin) bf16; w_bb: (Cin, Cf) bf16; w_head: (Cf, Ch) bf16.
    Returns (feat (R, Cf) bf16, head (R, Ch) f32)."""
    Cin = x_flat.shape[1]
    Cf = w_bb.shape[1]
    Ch = w_head.shape[1]
    x_flat, tile_r, R, r_pad = _row_tile_and_pad(x_flat)
    grid = (r_pad // tile_r,)
    feat, head = pl.pallas_call(
        _fused_stem_head_kernel,
        out_shape=(
            jax.ShapeDtypeStruct((r_pad, Cf), jnp.bfloat16),
            jax.ShapeDtypeStruct((r_pad, Ch), jnp.float32),
        ),
        grid_spec=pltpu.PrefetchScalarGridSpec(
            num_scalar_prefetch=0,
            grid=grid,
            in_specs=[
                pl.BlockSpec((tile_r, Cin), lambda i: (i, 0)),
                pl.BlockSpec((Cin, Cf), lambda i: (0, 0)),
                pl.BlockSpec((Cf, Ch), lambda i: (0, 0)),
            ],
            out_specs=(
                pl.BlockSpec((tile_r, Cf), lambda i: (i, 0)),
                pl.BlockSpec((tile_r, Ch), lambda i: (i, 0)),
            ),
        ),
        compiler_params=pltpu.CompilerParams(
            dimension_semantics=("parallel",),
            vmem_limit_bytes=_VMEM_LIMIT,
        ),
    )(x_flat, w_bb, w_head)
    if r_pad != R:
        feat = feat[:R]
        head = head[:R]
    return feat, head


def proj_sigmoid(x_flat, w):
    """x_flat: (R, Cin) bf16; w: (Cin, Cout) bf16 -> (R, Cout) f32."""
    Cin = x_flat.shape[1]
    Cout = w.shape[1]
    x_flat, tile_r, R, r_pad = _row_tile_and_pad(x_flat)
    grid = (r_pad // tile_r,)
    out = pl.pallas_call(
        _proj_sigmoid_kernel,
        out_shape=jax.ShapeDtypeStruct((r_pad, Cout), jnp.float32),
        grid_spec=pltpu.PrefetchScalarGridSpec(
            num_scalar_prefetch=0,
            grid=grid,
            in_specs=[
                pl.BlockSpec((tile_r, Cin), lambda i: (i, 0)),
                pl.BlockSpec((Cin, Cout), lambda i: (0, 0)),
            ],
            out_specs=pl.BlockSpec((tile_r, Cout), lambda i: (i, 0)),
        ),
        compiler_params=pltpu.CompilerParams(
            dimension_semantics=("parallel",),
            vmem_limit_bytes=_VMEM_LIMIT,
        ),
    )(x_flat, w)
    if r_pad != R:
        out = out[:R]
    return out


# -----------------------------------------------------------------------------
# Model pieces
# -----------------------------------------------------------------------------
def detection_head_get_n_channels(n_classes):
    # TODO(synk): DetectionHead.get_n_channels is not given; use n_classes + 8
    # (class scores + box center/size + objectness) as a deterministic stand-in.
    return n_classes + 8


def init_params(key, in_channels, head_feature_channels, head_channels, n_heads,
                orient_dim=4):
    ks = jax.random.split(key, 3 + n_heads)
    params = {}
    # Weights stored pre-transposed as (Cin, Cout) so no per-call transpose.
    params["backbone_w"] = jax.random.normal(
        ks[0], (in_channels, head_feature_channels), jnp.float32
    ) / jnp.sqrt(in_channels)
    params["head_proj_w"] = [
        jax.random.normal(ks[1 + i], (head_feature_channels, head_channels),
                          jnp.float32) / jnp.sqrt(head_feature_channels)
        for i in range(n_heads)
    ]
    params["orient_w"] = jax.random.normal(
        ks[1 + n_heads], (head_feature_channels, orient_dim), jnp.float32
    ) / jnp.sqrt(head_feature_channels)
    params["orient_b"] = jnp.zeros((orient_dim,), jnp.float32)
    return params


@partial(jax.jit, static_argnames=("n_tracking_frames", "n_heads", "single_head"))
def detection_model_forward(params, x, n_tracking_frames, n_heads,
                            single_head=False):
    """Equivalent of DetectionModel.forward with batch=None,
    output_type=DetectionOutputType.Detections, eval mode.

    x: (n_tracking_frames * batch, C, D, H, W)  (NCDHW, like torch Conv3d).
    """
    T = n_tracking_frames
    TB = x.shape[0]
    B = TB // T

    # Channels-last once, then stay channels-last end-to-end.
    x_nd = jnp.transpose(x, (0, 2, 3, 4, 1))                 # (TB, D, H, W, Cin)
    _, D, H, W, Cin = x_nd.shape
    x_flat = x_nd.reshape(TB * D * H * W, Cin).astype(jnp.bfloat16)

    w_bb = params["backbone_w"].astype(jnp.bfloat16)          # (Cin, Cf)
    w_heads = [w.astype(jnp.bfloat16) for w in params["head_proj_w"]]
    Cf = w_bb.shape[1]
    Ch = w_heads[0].shape[1]

    # --- Level 0: fused backbone stem + ReLU + head projection + sigmoid -----
    # TODO(synk): get_backbone / DetectionHead internals are not provided; the
    # backbone is a 1x1x1-conv + ReLU stem with avg-pooled pyramid levels and
    # out_transform is realized as a sigmoid on the projected channels.
    feat0_flat, head0_flat = fused_stem_head(x_flat, w_bb, w_heads[0])
    feat0 = feat0_flat.reshape(TB, D, H, W, Cf)               # bf16, NDHWC

    # --- Remaining pyramid levels via 2x avg-pooling of NDHWC features -------
    levels_feat = [feat0]
    cur = feat0
    for _ in range(1, n_heads):
        n, d, h, w_, c = cur.shape
        cur = jnp.mean(
            cur.reshape(n, d // 2, 2, h // 2, 2, w_ // 2, 2, c).astype(jnp.float32),
            axis=(2, 4, 6),
        ).astype(jnp.bfloat16)
        levels_feat.append(cur)
    # TODO(synk): the backbone's per-level 'context' tensors are only consumed
    # for DetectionOutputType.Features, so they are not materialized here.

    # --- Per-head projections (levels > 0 re-use the proj+sigmoid kernel) ----
    head_data_list = []
    for i in range(n_heads):
        if single_head and i < n_heads - 1:
            continue
        if i == 0:
            head_flat = head0_flat
            d, h, w_ = D, H, W
        else:
            feat_i = levels_feat[i]
            _, d, h, w_, _ = feat_i.shape
            head_flat = proj_sigmoid(feat_i.reshape(-1, Cf), w_heads[i])
        # rearrange '(t b) d h w c -> t b (d h w) c'
        head_features = head_flat.reshape(T, B, d * h * w_, Ch)
        head_data_list.append(head_features)

    # --- Orientation module on the last pyramid level -----------------------
    # TODO(synk): OrientationModule internals are not provided; realized as
    # global-average-pool + linear.  Tiny matmul -> plain jnp (XLA fuses it).
    last_feat = levels_feat[-1]
    pooled = jnp.mean(last_feat.astype(jnp.float32), axis=(1, 2, 3))   # (TB, Cf)
    orient = pooled @ params["orient_w"] + params["orient_b"]
    orientation_data = orient.reshape(T, B, -1)

    output = {"orientation": orientation_data}
    # DetectionOutputType.Detections: last tracking frame of every head,
    # concatenated along the voxel axis.
    last_frames = [data[-1] for data in head_data_list]        # each (B, S_i, Ch)
    features = jnp.concatenate(last_frames, axis=1)            # (B, sum S_i, Ch)
    # TODO(synk): DataTable is not provided; return raw per-batch tables.
    output["detections"] = [features[b] for b in range(B)]
    return output


# -----------------------------------------------------------------------------
# Main
# -----------------------------------------------------------------------------
if __name__ == "__main__":
    key = jax.random.PRNGKey(0)
    k_param, k_in = jax.random.split(key)

    # Small shapes consistent with the module:
    n_tracking_frames = 2
    batch = 2
    in_shape = (4, 4, 8, 8)          # (C, D, H, W)
    n_classes = 3
    n_heads = 2

    head_channels = detection_head_get_n_channels(n_classes)    # 11
    head_feature_channels = head_channels * 4                    # 44

    params = init_params(k_param, in_channels=in_shape[0],
                         head_feature_channels=head_feature_channels,
                         head_channels=head_channels, n_heads=n_heads)

    # Input: (n_tracking_frames * batch, C, D, H, W) -- NCDHW like torch Conv3d.
    x = jax.random.normal(
        k_in, (n_tracking_frames * batch, *in_shape), dtype=jnp.float32
    )

    out = detection_model_forward(params, x, n_tracking_frames, n_heads)
    jax.block_until_ready(out)

    # Basic shape sanity checks.
    assert out["orientation"].shape == (n_tracking_frames, batch, 4)
    s_total = (4 * 8 * 8) + (2 * 4 * 4)   # voxels of level0 + level1
    assert len(out["detections"]) == batch
    assert out["detections"][0].shape == (s_total, head_channels)
    assert bool(jnp.all(jnp.isfinite(out["detections"][0])))

    print("KERNEL_OK")
</pallas_src>

<mosaic_0001>
module attributes {stable_mosaic.version = 11 : i64} {
  func.func @_fused_stem_head_kernel(%arg0: i32, %arg1: memref<512x4xbf16, #tpu.memory_space<vmem>>, %arg2: memref<4x44xbf16, #tpu.memory_space<vmem>>, %arg3: memref<44x11xbf16, #tpu.memory_space<vmem>>, %arg4: memref<512x44xbf16, #tpu.memory_space<vmem>>, %arg5: memref<512x11xf32, #tpu.memory_space<vmem>>) attributes {dimension_semantics = [#tpu.dimension_semantics<parallel>], iteration_bounds = array<i64: 2>, scalar_prefetch = 0 : i64, scratch_operands = 0 : i64, tpu.core_type = #tpu.core_type<tc>, window_params = [{transform_indices = @transform_0, window_bounds = array<i64: 512, 4>}, {pipeline_mode = #tpu.pipeline_mode<synchronous>, transform_indices = @transform_1, window_bounds = array<i64: 4, 44>}, {pipeline_mode = #tpu.pipeline_mode<synchronous>, transform_indices = @transform_2, window_bounds = array<i64: 44, 11>}, {transform_indices = @transform_3, window_bounds = array<i64: 512, 44>}, {transform_indices = @transform_4, window_bounds = array<i64: 512, 11>}]} {
    %c0 = arith.constant 0 : index
    %c0_0 = arith.constant 0 : index
    %0 = vector.load %arg1[%c0, %c0_0] : memref<512x4xbf16, #tpu.memory_space<vmem>>, vector<512x4xbf16>
    %c0_1 = arith.constant 0 : index
    %c0_2 = arith.constant 0 : index
    %1 = vector.load %arg2[%c0_1, %c0_2] : memref<4x44xbf16, #tpu.memory_space<vmem>>, vector<4x44xbf16>
    %cst = arith.constant dense<0.000000e+00> : vector<512x44xf32>
    %2 = tpu.matmul %0, %1, %cst {dimension_numbers = #tpu.dot_dimension_numbers<[1], [0], [0], [1], [0, 0, 1, 1], [], []>} : vector<512x4xbf16>, vector<4x44xbf16>, vector<512x44xf32> -> vector<512x44xf32>
    %cst_3 = arith.constant 0.000000e+00 : f32
    %3 = vector.broadcast %cst_3 : f32 to vector<512x44xf32>
    %4 = arith.maximumf %2, %3 : vector<512x44xf32>
    %5 = arith.truncf %4 : vector<512x44xf32> to vector<512x44xbf16>
    %c0_4 = arith.constant 0 : index
    %c0_5 = arith.constant 0 : index
    %6 = vector.load %arg4[%c0_4, %c0_5] : memref<512x44xbf16, #tpu.memory_space<vmem>>, vector<512x44xbf16>
    tpu.vector_store %arg4[%c0_4, %c0_5], %5 {strides = array<i32>} : memref<512x44xbf16, #tpu.memory_space<vmem>>, vector<512x44xbf16>,
    %7 = arith.truncf %4 : vector<512x44xf32> to vector<512x44xbf16>
    %c0_6 = arith.constant 0 : index
    %c0_7 = arith.constant 0 : index
    %8 = vector.load %arg3[%c0_6, %c0_7] : memref<44x11xbf16, #tpu.memory_space<vmem>>, vector<44x11xbf16>
    %cst_8 = arith.constant dense<0.000000e+00> : vector<512x11xf32>
    %9 = tpu.matmul %7, %8, %cst_8 {dimension_numbers = #tpu.dot_dimension_numbers<[1], [0], [0], [1], [0, 0, 1, 1], [], []>} : vector<512x44xbf16>, vector<44x11xbf16>, vector<512x11xf32> -> vector<512x11xf32>
    %10 = arith.negf %9 : vector<512x11xf32>
    %11 = math.exp %10 : vector<512x11xf32>
    %cst_9 = arith.constant 1.000000e+00 : f32
    %12 = vector.broadcast %cst_9 : f32 to vector<512x11xf32>
    %13 = arith.addf %12, %11 : vector<512x11xf32>
    %14 = arith.divf %12, %13 : vector<512x11xf32>
    %c0_10 = arith.constant 0 : index
    %c0_11 = arith.constant 0 : index
    %15 = vector.load %arg5[%c0_10, %c0_11] : memref<512x11xf32, #tpu.memory_space<vmem>>, vector<512x11xf32>
    tpu.vector_store %arg5[%c0_10, %c0_11], %14 {strides = array<i32>} : memref<512x11xf32, #tpu.memory_space<vmem>>, vector<512x11xf32>,
    return
  }
  func.func @transform_0(%arg0: i32) -> (i32, i32) {
    %c0_i32 = arith.constant 0 : i32
    %c0_i32_0 = arith.constant 0 : i32
    return %arg0, %c0_i32 : i32, i32
  }
  func.func @transform_1(%arg0: i32) -> (i32, i32) {
    %c0_i32 = arith.constant 0 : i32
    %c0_i32_0 = arith.constant 0 : i32
    %c0_i32_1 = arith.constant 0 : i32
    return %c0_i32, %c0_i32_0 : i32, i32
  }
  func.func @transform_2(%arg0: i32) -> (i32, i32) {
    %c0_i32 = arith.constant 0 : i32
    %c0_i32_0 = arith.constant 0 : i32
    %c0_i32_1 = arith.constant 0 : i32
    return %c0_i32, %c0_i32_0 : i32, i32
  }
  func.func @transform_3(%arg0: i32) -> (i32, i32) {
    %c0_i32 = arith.constant 0 : i32
    %c0_i32_0 = arith.constant 0 : i32
    return %arg0, %c0_i32 : i32, i32
  }
  func.func @transform_4(%arg0: i32) -> (i32, i32) {
    %c0_i32 = arith.constant 0 : i32
    %c0_i32_0 = arith.constant 0 : i32
    return %arg0, %c0_i32 : i32, i32
  }
}

module attributes {stable_mosaic.version = 11 : i64} {
  func.func @_proj_sigmoid_kernel(%arg0: i32, %arg1: memref<128x44xbf16, #tpu.memory_space<vmem>>, %arg2: memref<44x11xbf16, #tpu.memory_space<vmem>>, %arg3: memref<128x11xf32, #tpu.memory_space<vmem>>) attributes {dimension_semantics = [#tpu.dimension_semantics<parallel>], iteration_bounds = array<i64: 1>, scalar_prefetch = 0 : i64, scratch_operands = 0 : i64, tpu.core_type = #tpu.core_type<tc>, window_params = [{transform_indices = @transform_0, window_bounds = array<i64: 128, 44>}, {pipeline_mode = #tpu.pipeline_mode<synchronous>, transform_indices = @transform_1, window_bounds = array<i64: 44, 11>}, {transform_indices = @transform_2, window_bounds = array<i64: 128, 11>}]} {
    %c0 = arith.constant 0 : index
    %c0_0 = arith.constant 0 : index
    %0 = vector.load %arg1[%c0, %c0_0] : memref<128x44xbf16, #tpu.memory_space<vmem>>, vector<128x44xbf16>
    %c0_1 = arith.constant 0 : index
    %c0_2 = arith.constant 0 : index
    %1 = vector.load %arg2[%c0_1, %c0_2] : memref<44x11xbf16, #tpu.memory_space<vmem>>, vector<44x11xbf16>
    %cst = arith.constant dense<0.000000e+00> : vector<128x11xf32>
    %2 = tpu.matmul %0, %1, %cst {dimension_numbers = #tpu.dot_dimension_numbers<[1], [0], [0], [1], [0, 0, 1, 1], [], []>} : vector<128x44xbf16>, vector<44x11xbf16>, vector<128x11xf32> -> vector<128x11xf32>
    %3 = arith.negf %2 : vector<128x11xf32>
    %4 = math.exp %3 : vector<128x11xf32>
    %cst_3 = arith.constant 1.000000e+00 : f32
    %5 = vector.broadcast %cst_3 : f32 to vector<128x11xf32>
    %6 = arith.addf %5, %4 : vector<128x11xf32>
    %7 = arith.divf %5, %6 : vector<128x11xf32>
    %c0_4 = arith.constant 0 : index
    %c0_5 = arith.constant 0 : index
    %8 = vector.load %arg3[%c0_4, %c0_5] : memref<128x11xf32, #tpu.memory_space<vmem>>, vector<128x11xf32>
    tpu.vector_store %arg3[%c0_4, %c0_5], %7 {strides = array<i32>} : memref<128x11xf32, #tpu.memory_space<vmem>>, vector<128x11xf32>,
    return
  }
  func.func @transform_0(%arg0: i32) -> (i32, i32) {
    %c0_i32 = arith.constant 0 : i32
    %c0_i32_0 = arith.constant 0 : i32
    return %arg0, %c0_i32 : i32, i32
  }
  func.func @transform_1(%arg0: i32) -> (i32, i32) {
    %c0_i32 = arith.constant 0 : i32
    %c0_i32_0 = arith.constant 0 : i32
    %c0_i32_1 = arith.constant 0 : i32
    return %c0_i32, %c0_i32_0 : i32, i32
  }
  func.func @transform_2(%arg0: i32) -> (i32, i32) {
    %c0_i32 = arith.constant 0 : i32
    %c0_i32_0 = arith.constant 0 : i32
    return %arg0, %c0_i32 : i32, i32
  }
}

</mosaic_0001>

<llo_original>
// kernel: detection_model_forward.3
$region0: #{detection_model_forward.3}
  #allocation0 [shape = 'u32[]', space=smem, size = 0x4, offset = 0x4, fixed_abs, tag = 'smem constant byte address 0x4 - core index']
  #allocation1 [shape = 'u32[72,128]{1,0:T(1,128)}', space=vmem, size = 0x9000, scoped, tag = 'internal scratch']
  %s0 = inlined_call_operand.vmem [shape: bf16[128,44], index: 0, kind: input, shape index: {}]
  %s1 = inlined_call_operand.vmem [shape: bf16[44,11], index: 1, kind: input, shape index: {}]
  %s2 = inlined_call_operand.vmem [shape: f32[128,11], index: 2, kind: output, shape index: {}]
  %s3 = sld [smem:[#allocation0]]
  $region18: #{detection_model_forward.3} parent=0
    _
  %s5 = ssub.s32 1, %s3
  %s6 = scalar_select 0, %s5, %s3
  // Predicated region
  $region2: #{detection_model_forward.3} parent=0 // pred_check
    _
  $region3: #{detection_model_forward.3} parent=0 // pred_check_branch
    %8 = sbr.rel (0) target = $region5
  $region4: #{detection_model_forward.3} parent=0 // pred_region
    _
  $region5: #{detection_model_forward.3} parent=0 // pred_fallthru
    _
  // Predicated region
  $region6: #{detection_model_forward.3} parent=0 // pred_check
    _
  $region7: #{detection_model_forward.3} parent=0 // pred_check_branch
    %10 = sbr.rel (0) target = $region9
  $region8: #{detection_model_forward.3} parent=0 // pred_region
    _
  $region9: #{detection_model_forward.3} parent=0 // pred_fallthru
    _
  %v12 = vld [vmem:[%s0] sm:$0xf]
  %v13 = vld [vmem:[%s0 + $0x4] sm:$0xf]
  %v14 = vld [vmem:[%s0 + $0x8] sm:$0xf]
  %v15 = vld [vmem:[%s0 + $0xc] sm:$0xf]
  %v16 = vld [vmem:[%s0 + $0x10] sm:$0xf]
  %v17 = vld [vmem:[%s0 + $0x14] sm:$0xf]
  %v18 = vld [vmem:[%s0 + $0x18] sm:$0xf]
  %v19 = vld [vmem:[%s0 + $0x1c] sm:$0xf]
  %v20 = vld [vmem:[%s0 + $0x20] sm:$0xf]
  %v21 = vld [vmem:[%s0 + $0x24] sm:$0xf]
  %v22 = vld [vmem:[%s0 + $0x28] sm:$0xf]
  %v23 = vld [vmem:[%s0 + $0x2c] sm:$0xf]
  %v24 = vld [vmem:[%s0 + $0x30] sm:$0xf]
  %v25 = vld [vmem:[%s0 + $0x34] sm:$0xf]
  %v26 = vld [vmem:[%s0 + $0x38] sm:$0xf]
  %v27 = vld [vmem:[%s0 + $0x3c] sm:$0xf]
  %v28 = vld [vmem:[%s1] sm:$0xf]
  %v29 = vld [vmem:[%s1 + $0x4] sm:$0xf]
  %v30 = vld [vmem:[%s1 + $0x8] sm:$0xf]
  %v31 = vld [vmem:[%s1 + $0xc] sm:$0xf]
  %v32 = vld [vmem:[%s1 + $0x10] sm:$0xf]
  %v33 = vld [vmem:[%s1 + $0x14] sm:$0x3]
  %v50 = vunpack.c.l.b16 %v12
  %v51 = vunpack.c.l.b16 %v13
  %v52 = vunpack.c.l.b16 %v14
  %v53 = vunpack.c.l.b16 %v15
  %v54 = vunpack.c.l.b16 %v16
  %v55 = vunpack.c.l.b16 %v17
  %v56 = vunpack.c.l.b16 %v18
  %v57 = vunpack.c.l.b16 %v19
  %v58 = vunpack.c.l.b16 %v20
  %v59 = vunpack.c.l.b16 %v21
  %v60 = vunpack.c.l.b16 %v22
  %v61 = vunpack.c.l.b16 %v23
  %v62 = vunpack.c.l.b16 %v24
  %v63 = vunpack.c.l.b16 %v25
  %v64 = vunpack.c.l.b16 %v26
  %v65 = vunpack.c.l.b16 %v27
  %v66 = vpack.c.b16 %v51, %v50
  %v67 = vpack.c.b16 %v53, %v52
  %v68 = vpack.c.b16 %v55, %v54
  %v69 = vpack.c.b16 %v57, %v56
  %v70 = vpack.c.b16 %v59, %v58
  %v71 = vpack.c.b16 %v61, %v60
  %v72 = vpack.c.b16 %v63, %v62
  %v73 = vpack.c.b16 %v65, %v64
  %v80 = vunpack.c.l.b16 %v28
  %v81 = vunpack.c.l.b16 %v29
  %v82 = vunpack.c.l.b16 %v30
  %v83 = vunpack.c.l.b16 %v31
  %v84 = vunpack.c.l.b16 %v32
  %v85 = vunpack.c.l.b16 %v33
  %v86 = vpack.c.b16 %v81, %v80
  %v87 = vpack.c.b16 %v83, %v82
  %v88 = vpack.c.b16 %v85, %v84
  %vm91 = vcmask 359424
  %v93 = vsel %vm91, %v66, 0
  %v96 = vsel %vm91, %v67, 0
  %v99 = vsel %vm91, %v68, 0
  %v102 = vsel %vm91, %v69, 0
  %v105 = vsel %vm91, %v70, 0
  %v108 = vsel %vm91, %v71, 0
  %v111 = vsel %vm91, %v72, 0
  %v114 = vsel %vm91, %v73, 0
  %vm116 = vcmask 1045504
  %v118 = vsel %vm116, %v88, 0
  %120 = vmatpush.bf16.msra.mxu0 0
  %121 = vmatpush.bf16.msra.mxu0 0
  %122 = vmatpush.bf16.msra.mxu0 0
  %123 = vmatpush.bf16.msra.mxu0 0
  %124 = vmatpush.bf16.msra.mxu0 0
  %125 = vmatpush.bf16.msra.mxu0 %v118
  %126 = vmatpush.bf16.msra.mxu0 %v87
  %127 = vmatpush.bf16.msra.mxu0 %v86
  %128 = vmatmul.bf16.gmra.mxu0 %v93
  %v129 = vpop.f32.mrf.mxu0
  %v130 = vadd.f32 0.0, %v129
  %v131 = vpop.f32.mrf.mxu0
  %v132 = vadd.f32 0.0, %v131
  %133 = vmatmul.bf16.gmra.mxu0 %v96
  %v134 = vpop.f32.mrf.mxu0
  %v135 = vadd.f32 0.0, %v134
  %v136 = vpop.f32.mrf.mxu0
  %v137 = vadd.f32 0.0, %v136
  %138 = vmatmul.bf16.gmra.mxu0 %v99
  %v139 = vpop.f32.mrf.mxu0
  %v140 = vadd.f32 0.0, %v139
  %v141 = vpop.f32.mrf.mxu0
  %v142 = vadd.f32 0.0, %v141
  %143 = vmatmul.bf16.gmra.mxu0 %v102
  %v144 = vpop.f32.mrf.mxu0
  %v145 = vadd.f32 0.0, %v144
  %v146 = vpop.f32.mrf.mxu0
  %v147 = vadd.f32 0.0, %v146
  %148 = vmatmul.bf16.gmra.mxu0 %v105
  %v149 = vpop.f32.mrf.mxu0
  %v150 = vadd.f32 0.0, %v149
  %v151 = vpop.f32.mrf.mxu0
  %v152 = vadd.f32 0.0, %v151
  %153 = vmatmul.bf16.gmra.mxu0 %v108
  %v154 = vpop.f32.mrf.mxu0
  %v155 = vadd.f32 0.0, %v154
  %v156 = vpop.f32.mrf.mxu0
  %v157 = vadd.f32 0.0, %v156
  %158 = vmatmul.bf16.gmra.mxu0 %v111
  %v159 = vpop.f32.mrf.mxu0
  %v160 = vadd.f32 0.0, %v159
  %v161 = vpop.f32.mrf.mxu0
  %v162 = vadd.f32 0.0, %v161
  %163 = vmatmul.bf16.gmra.mxu0 %v114
  %v164 = vpop.f32.mrf.mxu0
  %v165 = vadd.f32 0.0, %v164
  %v166 = vpop.f32.mrf.mxu0
  %v167 = vadd.f32 0.0, %v166
  %168 = vdwg.mxu0
  %v169 = vxor.u32 %v130, 2147483648
  %v170 = vxor.u32 %v132, 2147483648
  %v171 = vxor.u32 %v135, 2147483648
  %v172 = vxor.u32 %v137, 2147483648
  %v173 = vxor.u32 %v140, 2147483648
  %v174 = vxor.u32 %v142, 2147483648
  %v175 = vxor.u32 %v145, 2147483648
  %v176 = vxor.u32 %v147, 2147483648
  %v177 = vxor.u32 %v150, 2147483648
  %v178 = vxor.u32 %v152, 2147483648
  %v179 = vxor.u32 %v155, 2147483648
  %v180 = vxor.u32 %v157, 2147483648
  %v181 = vxor.u32 %v160, 2147483648
  %v182 = vxor.u32 %v162, 2147483648
  %v183 = vxor.u32 %v165, 2147483648
  %v184 = vxor.u32 %v167, 2147483648
  %v185 = vmul.f32 %v169, 1.442695
  %v186 = vpow.pop %v185
  %v187 = vmul.f32 %v170, 1.442695
  %v188 = vpow.pop %v187
  %v189 = vmul.f32 %v171, 1.442695
  %v190 = vpow.pop %v189
  %v191 = vmul.f32 %v172, 1.442695
  %v192 = vpow.pop %v191
  %v193 = vmul.f32 %v173, 1.442695
  %v194 = vpow.pop %v193
  %v195 = vmul.f32 %v174, 1.442695
  %v196 = vpow.pop %v195
  %v197 = vmul.f32 %v175, 1.442695
  %v198 = vpow.pop %v197
  %v199 = vmul.f32 %v176, 1.442695
  %v200 = vpow.pop %v199
  %v201 = vmul.f32 %v177, 1.442695
  %v202 = vpow.pop %v201
  %v203 = vmul.f32 %v178, 1.442695
  %v204 = vpow.pop %v203
  %v205 = vmul.f32 %v179, 1.442695
  %v206 = vpow.pop %v205
  %v207 = vmul.f32 %v180, 1.442695
  %v208 = vpow.pop %v207
  %v209 = vmul.f32 %v181, 1.442695
  %v210 = vpow.pop %v209
  %v211 = vmul.f32 %v182, 1.442695
  %v212 = vpow.pop %v211
  %v213 = vmul.f32 %v183, 1.442695
  %v214 = vpow.pop %v213
  %v215 = vmul.f32 %v184, 1.442695
  %v216 = vpow.pop %v215
  %v217 = vadd.f32 %v186, 1.0
  %v218 = vadd.f32 %v188, 1.0
  %v219 = vadd.f32 %v190, 1.0
  %v220 = vadd.f32 %v192, 1.0
  %v221 = vadd.f32 %v194, 1.0
  %v222 = vadd.f32 %v196, 1.0
  %v223 = vadd.f32 %v198, 1.0
  %v224 = vadd.f32 %v200, 1.0
  %v225 = vadd.f32 %v202, 1.0
  %v226 = vadd.f32 %v204, 1.0
  %v227 = vadd.f32 %v206, 1.0
  %v228 = vadd.f32 %v208, 1.0
  %v229 = vadd.f32 %v210, 1.0
  %v230 = vadd.f32 %v212, 1.0
  %v231 = vadd.f32 %v214, 1.0
  %v232 = vadd.f32 %v216, 1.0
  %v233 = vrcp.pop %v217
  %v234 = vmul.f32 %v217, %v233
  %v235 = vsub.f32 1.0, %v234
  %v236 = vmul.f32 %v233, %v235
  %v237 = vadd.f32 %v233, %v236
  %vm238 = vweird.f32 %v217
  %vm239 = vweird.f32 %v233
  %vm240 = vmor %vm238, %vm239
  %v241 = vsel %vm240, %v233, %v237
  %v242 = vand.u32 2147483647, %v217
  %vm243 = vcmp.eq.f32.partialorder %v242, 8.507059e+37
  %v244 = vand.u32 %v217, 2147483648
  %v245 = vor.u32 1.1754944e-38, %v244
  %v246 = vsel %vm243, %v245, %v241
  %v247 = vmul.f32 1.0, %v246
  %v248 = vrcp.pop %v218
  %v249 = vmul.f32 %v218, %v248
  %v250 = vsub.f32 1.0, %v249
  %v251 = vmul.f32 %v248, %v250
  %v252 = vadd.f32 %v248, %v251
  %vm253 = vweird.f32 %v218
  %vm254 = vweird.f32 %v248
  %vm255 = vmor %vm253, %vm254
  %v256 = vsel %vm255, %v248, %v252
  %v257 = vand.u32 2147483647, %v218
  %vm258 = vcmp.eq.f32.partialorder %v257, 8.507059e+37
  %v259 = vand.u32 %v218, 2147483648
  %v260 = vor.u32 1.1754944e-38, %v259
  %v261 = vsel %vm258, %v260, %v256
  %v262 = vmul.f32 1.0, %v261
  %v263 = vrcp.pop %v219
  %v264 = vmul.f32 %v219, %v263
  %v265 = vsub.f32 1.0, %v264
  %v266 = vmul.f32 %v263, %v265
  %v267 = vadd.f32 %v263, %v266
  %vm268 = vweird.f32 %v219
  %vm269 = vweird.f32 %v263
  %vm270 = vmor %vm268, %vm269
  %v271 = vsel %vm270, %v263, %v267
  %v272 = vand.u32 2147483647, %v219
  %vm273 = vcmp.eq.f32.partialorder %v272, 8.507059e+37
  %v274 = vand.u32 %v219, 2147483648
  %v275 = vor.u32 1.1754944e-38, %v274
  %v276 = vsel %vm273, %v275, %v271
  %v277 = vmul.f32 1.0, %v276
  %v278 = vrcp.pop %v220
  %v279 = vmul.f32 %v220, %v278
  %v280 = vsub.f32 1.0, %v279
  %v281 = vmul.f32 %v278, %v280
  %v282 = vadd.f32 %v278, %v281
  %vm283 = vweird.f32 %v220
  %vm284 = vweird.f32 %v278
  %vm285 = vmor %vm283, %vm284
  %v286 = vsel %vm285, %v278, %v282
  %v287 = vand.u32 2147483647, %v220
  %vm288 = vcmp.eq.f32.partialorder %v287, 8.507059e+37
  %v289 = vand.u32 %v220, 2147483648
  %v290 = vor.u32 1.1754944e-38, %v289
  %v291 = vsel %vm288, %v290, %v286
  %v292 = vmul.f32 1.0, %v291
  %v293 = vrcp.pop %v221
  %v294 = vmul.f32 %v221, %v293
  %v295 = vsub.f32 1.0, %v294
  %v296 = vmul.f32 %v293, %v295
  %v297 = vadd.f32 %v293, %v296
  %vm298 = vweird.f32 %v221
  %vm299 = vweird.f32 %v293
  %vm300 = vmor %vm298, %vm299
  %v301 = vsel %vm300, %v293, %v297
  %v302 = vand.u32 2147483647, %v221
  %vm303 = vcmp.eq.f32.partialorder %v302, 8.507059e+37
  %v304 = vand.u32 %v221, 2147483648
  %v305 = vor.u32 1.1754944e-38, %v304
  %v306 = vsel %vm303, %v305, %v301
  %v307 = vmul.f32 1.0, %v306
  %v308 = vrcp.pop %v222
  %v309 = vmul.f32 %v222, %v308
  %v310 = vsub.f32 1.0, %v309
  %v311 = vmul.f32 %v308, %v310
  %v312 = vadd.f32 %v308, %v311
  %vm313 = vweird.f32 %v222
  %vm314 = vweird.f32 %v308
  %vm315 = vmor %vm313, %vm314
  %v316 = vsel %vm315, %v308, %v312
  %v317 = vand.u32 2147483647, %v222
  %vm318 = vcmp.eq.f32.partialorder %v317, 8.507059e+37
  %v319 = vand.u32 %v222, 2147483648
  %v320 = vor.u32 1.1754944e-38, %v319
  %v321 = vsel %vm318, %v320, %v316
  %v322 = vmul.f32 1.0, %v321
  %v323 = vrcp.pop %v223
  %v324 = vmul.f32 %v223, %v323
  %v325 = vsub.f32 1.0, %v324
  %v326 = vmul.f32 %v323, %v325
  %v327 = vadd.f32 %v323, %v326
  %vm328 = vweird.f32 %v223
  %vm329 = vweird.f32 %v323
  %vm330 = vmor %vm328, %vm329
  %v331 = vsel %vm330, %v323, %v327
  %v332 = vand.u32 2147483647, %v223
  %vm333 = vcmp.eq.f32.partialorder %v332, 8.507059e+37
  %v334 = vand.u32 %v223, 2147483648
  %v335 = vor.u32 1.1754944e-38, %v334
  %v336 = vsel %vm333, %v335, %v331
  %v337 = vmul.f32 1.0, %v336
  %v338 = vrcp.pop %v224
  %v339 = vmul.f32 %v224, %v338
  %v340 = vsub.f32 1.0, %v339
  %v341 = vmul.f32 %v338, %v340
  %v342 = vadd.f32 %v338, %v341
  %vm343 = vweird.f32 %v224
  %vm344 = vweird.f32 %v338
  %vm345 = vmor %vm343, %vm344
  %v346 = vsel %vm345, %v338, %v342
  %v347 = vand.u32 2147483647, %v224
  %vm348 = vcmp.eq.f32.partialorder %v347, 8.507059e+37
  %v349 = vand.u32 %v224, 2147483648
  %v350 = vor.u32 1.1754944e-38, %v349
  %v351 = vsel %vm348, %v350, %v346
  %v352 = vmul.f32 1.0, %v351
  %v353 = vrcp.pop %v225
  %v354 = vmul.f32 %v225, %v353
  %v355 = vsub.f32 1.0, %v354
  %v356 = vmul.f32 %v353, %v355
  %v357 = vadd.f32 %v353, %v356
  %vm358 = vweird.f32 %v225
  %vm359 = vweird.f32 %v353
  %vm360 = vmor %vm358, %vm359
  %v361 = vsel %vm360, %v353, %v357
  %v362 = vand.u32 2147483647, %v225
  %vm363 = vcmp.eq.f32.partialorder %v362, 8.507059e+37
  %v364 = vand.u32 %v225, 2147483648
  %v365 = vor.u32 1.1754944e-38, %v364
  %v366 = vsel %vm363, %v365, %v361
  %v367 = vmul.f32 1.0, %v366
  %v368 = vrcp.pop %v226
  %v369 = vmul.f32 %v226, %v368
  %v370 = vsub.f32 1.0, %v369
  %v371 = vmul.f32 %v368, %v370
  %v372 = vadd.f32 %v368, %v371
  %vm373 = vweird.f32 %v226
  %vm374 = vweird.f32 %v368
  %vm375 = vmor %vm373, %vm374
  %v376 = vsel %vm375, %v368, %v372
  %v377 = vand.u32 2147483647, %v226
  %vm378 = vcmp.eq.f32.partialorder %v377, 8.507059e+37
  %v379 = vand.u32 %v226, 2147483648
  %v380 = vor.u32 1.1754944e-38, %v379
  %v381 = vsel %vm378, %v380, %v376
  %v382 = vmul.f32 1.0, %v381
  %v383 = vrcp.pop %v227
  %v384 = vmul.f32 %v227, %v383
  %v385 = vsub.f32 1.0, %v384
  %v386 = vmul.f32 %v383, %v385
  %v387 = vadd.f32 %v383, %v386
  %vm388 = vweird.f32 %v227
  %vm389 = vweird.f32 %v383
  %vm390 = vmor %vm388, %vm389
  %v391 = vsel %vm390, %v383, %v387
  %v392 = vand.u32 2147483647, %v227
  %vm393 = vcmp.eq.f32.partialorder %v392, 8.507059e+37
  %v394 = vand.u32 %v227, 2147483648
  %v395 = vor.u32 1.1754944e-38, %v394
  %v396 = vsel %vm393, %v395, %v391
  %v397 = vmul.f32 1.0, %v396
  %v398 = vrcp.pop %v228
  %v399 = vmul.f32 %v228, %v398
  %v400 = vsub.f32 1.0, %v399
  %v401 = vmul.f32 %v398, %v400
  %v402 = vadd.f32 %v398, %v401
  %vm403 = vweird.f32 %v228
  %vm404 = vweird.f32 %v398
  %vm405 = vmor %vm403, %vm404
  %v406 = vsel %vm405, %v398, %v402
  %v407 = vand.u32 2147483647, %v228
  %vm408 = vcmp.eq.f32.partialorder %v407, 8.507059e+37
  %v409 = vand.u32 %v228, 2147483648
  %v410 = vor.u32 1.1754944e-38, %v409
  %v411 = vsel %vm408, %v410, %v406
  %v412 = vmul.f32 1.0, %v411
  %v413 = vrcp.pop %v229
  %v414 = vmul.f32 %v229, %v413
  %v415 = vsub.f32 1.0, %v414
  %v416 = vmul.f32 %v413, %v415
  %v417 = vadd.f32 %v413, %v416
  %vm418 = vweird.f32 %v229
  %vm419 = vweird.f32 %v413
  %vm420 = vmor %vm418, %vm419
  %v421 = vsel %vm420, %v413, %v417
  %v422 = vand.u32 2147483647, %v229
  %vm423 = vcmp.eq.f32.partialorder %v422, 8.507059e+37
  %v424 = vand.u32 %v229, 2147483648
  %v425 = vor.u32 1.1754944e-38, %v424
  %v426 = vsel %vm423, %v425, %v421
  %v427 = vmul.f32 1.0, %v426
  %v428 = vrcp.pop %v230
  %v429 = vmul.f32 %v230, %v428
  %v430 = vsub.f32 1.0, %v429
  %v431 = vmul.f32 %v428, %v430
  %v432 = vadd.f32 %v428, %v431
  %vm433 = vweird.f32 %v230
  %vm434 = vweird.f32 %v428
  %vm435 = vmor %vm433, %vm434
  %v436 = vsel %vm435, %v428, %v432
  %v437 = vand.u32 2147483647, %v230
  %vm438 = vcmp.eq.f32.partialorder %v437, 8.507059e+37
  %v439 = vand.u32 %v230, 2147483648
  %v440 = vor.u32 1.1754944e-38, %v439
  %v441 = vsel %vm438, %v440, %v436
  %v442 = vmul.f32 1.0, %v441
  %v443 = vrcp.pop %v231
  %v444 = vmul.f32 %v231, %v443
  %v445 = vsub.f32 1.0, %v444
  %v446 = vmul.f32 %v443, %v445
  %v447 = vadd.f32 %v443, %v446
  %vm448 = vweird.f32 %v231
  %vm449 = vweird.f32 %v443
  %vm450 = vmor %vm448, %vm449
  %v451 = vsel %vm450, %v443, %v447
  %v452 = vand.u32 2147483647, %v231
  %vm453 = vcmp.eq.f32.partialorder %v452, 8.507059e+37
  %v454 = vand.u32 %v231, 2147483648
  %v455 = vor.u32 1.1754944e-38, %v454
  %v456 = vsel %vm453, %v455, %v451
  %v457 = vmul.f32 1.0, %v456
  %v458 = vrcp.pop %v232
  %v459 = vmul.f32 %v232, %v458
  %v460 = vsub.f32 1.0, %v459
  %v461 = vmul.f32 %v458, %v460
  %v462 = vadd.f32 %v458, %v461
  %vm463 = vweird.f32 %v232
  %vm464 = vweird.f32 %v458
  %vm465 = vmor %vm463, %vm464
  %v466 = vsel %vm465, %v458, %v462
  %v467 = vand.u32 2147483647, %v232
  %vm468 = vcmp.eq.f32.partialorder %v467, 8.507059e+37
  %v469 = vand.u32 %v232, 2147483648
  %v470 = vor.u32 1.1754944e-38, %v469
  %v471 = vsel %vm468, %v470, %v466
  %v472 = vmul.f32 1.0, %v471
  %vm473 = vcmask 89088
  %474 = vst.msk [vmem:[%s2] sm:$0xff] %vm473, %v247
  %475 = vst.msk [vmem:[%s2 + $0x8] sm:$0xff] %vm473, %v262
  %476 = vst.msk [vmem:[%s2 + $0x10] sm:$0xff] %vm473, %v277
  %477 = vst.msk [vmem:[%s2 + $0x18] sm:$0xff] %vm473, %v292
  %478 = vst.msk [vmem:[%s2 + $0x20] sm:$0xff] %vm473, %v307
  %479 = vst.msk [vmem:[%s2 + $0x28] sm:$0xff] %vm473, %v322
  %480 = vst.msk [vmem:[%s2 + $0x30] sm:$0xff] %vm473, %v337
  %481 = vst.msk [vmem:[%s2 + $0x38] sm:$0xff] %vm473, %v352
  %482 = vst.msk [vmem:[%s2 + $0x40] sm:$0xff] %vm473, %v367
  %483 = vst.msk [vmem:[%s2 + $0x48] sm:$0xff] %vm473, %v382
  %484 = vst.msk [vmem:[%s2 + $0x50] sm:$0xff] %vm473, %v397
  %485 = vst.msk [vmem:[%s2 + $0x58] sm:$0xff] %vm473, %v412
  %486 = vst.msk [vmem:[%s2 + $0x60] sm:$0xff] %vm473, %v427
  %487 = vst.msk [vmem:[%s2 + $0x68] sm:$0xff] %vm473, %v442
  %488 = vst.msk [vmem:[%s2 + $0x70] sm:$0xff] %vm473, %v457
  %489 = vst.msk [vmem:[%s2 + $0x78] sm:$0xff] %vm473, %v472
  // Predicated region
  $region10: #{detection_model_forward.3} parent=0 // pred_check
    _
  $region11: #{detection_model_forward.3} parent=0 // pred_check_branch
    %491 = sbr.rel (0) target = $region13
  $region12: #{detection_model_forward.3} parent=0 // pred_region
    _
  $region13: #{detection_model_forward.3} parent=0 // pred_fallthru
    _
  // Predicated region
  $region14: #{detection_model_forward.3} parent=0 // pred_check
    _
  $region15: #{detection_model_forward.3} parent=0 // pred_check_branch
    %493 = sbr.rel (0) target = $region17
  $region16: #{detection_model_forward.3} parent=0 // pred_region
    _
  $region17: #{detection_model_forward.3} parent=0 // pred_fallthru
    _

// kernel: detection_model_forward.2
$region0: #{detection_model_forward.2}
  #allocation0 [shape = 'u32[]', space=smem, size = 0x4, offset = 0x4, fixed_abs, tag = 'smem constant byte address 0x4 - core index']
  #allocation1 [shape = 'u32[72,128]{1,0:T(1,128)}', space=vmem, size = 0x9000, scoped, tag = 'internal scratch']
  %s0 = inlined_call_operand.vmem [shape: bf16[1024,4], index: 0, kind: input, shape index: {}]
  %s1 = inlined_call_operand.vmem [shape: bf16[4,44], index: 1, kind: input, shape index: {}]
  %s2 = inlined_call_operand.vmem [shape: bf16[44,11], index: 2, kind: input, shape index: {}]
  %s3 = inlined_call_operand.vmem [shape: bf16[1024,44], index: 3, kind: output, shape index: {0}]
  %s4 = inlined_call_operand.vmem [shape: f32[1024,11], index: 4, kind: output, shape index: {1}]
  %5 = xla_tuple %s3, %s4
  %s6 = sld [smem:[#allocation0]]
  $region53: #{detection_model_forward.2} parent=0
    _
  %s8 = ssub.s32 1, %s6
  %s9 = scalar_select 0, %s8, %s6
  loop: start=0, step=1, limit=4
  $region2: #{detection_model_forward.2} parent=0 // loop_pre_header
    _
  $region3: #{detection_model_forward.2} parent=0 // loop_header
    %s11 = sphi 0, %s15
    %p12 = scmp.ge.s32.totalorder %s11, 4
    %s21 = sphi 0, %s23
    %s24 = sphi 0, %s21
    %s25 = sphi 0, %s24
    %s41 = sphi 0, %s25
    %s45 = sphi 0, %s45
    %s47 = sphi 0, %s45
    %s48 = sphi 0, %s47
    %s62 = sphi 0, %s48
    %s66 = sphi 0, %s66
    %s68 = sphi 0, %s66
    %s69 = sphi 0, %s68
    %s83 = sphi 0, %s69
    %s89 = sphi 0, %s91
    %s92 = sphi 0, %s89
    %s93 = sphi 0, %s92
    %s109 = sphi 0, %s93
    %s115 = sphi 0, %s117
    %s118 = sphi 0, %s115
    %s119 = sphi 0, %s118
    %s135 = sphi 0, %s119
  $region4: #{detection_model_forward.2} parent=0 // loop_header_branch
    %14 = sbr.rel (%p12) target = $region8
  $region5: #{detection_model_forward.2} parent=0 // loop_body
    %s16 = ssub.s32 %s11, 1
    %s17 = ssub.s32 %s11, 2
    %s18 = sadd.s32 %s11, 1
    %s19 = ssub.s32 %s11, %s18
    %p20 = scmp.eq.s32.totalorder %s19, 0
    %s22 = sadd.s32 %s21, 1
    %s23 = scalar_select %p20, %s21, %s22
    %p26 = pneg %p20
    %p27 = scmp.eq.s32.totalorder %s11, 1
    %p28 = por %p26, %p27
    %p29 = scmp.ne.s32.totalorder %s21, %s24
    %p30 = scmp.eq.s32.totalorder %s11, 0
    %p31 = por %p29, %p30
    %p32 = scmp.ne.s32.totalorder %s21, %s24
    %p33 = scmp.eq.s32.totalorder %s16, 1
    %p34 = por %p32, %p33
    %p35 = scmp.ne.s32.totalorder %s24, %s25
    %p36 = scmp.eq.s32.totalorder %s16, 0
    %p37 = por %p35, %p36
    %p38 = scmp.ne.s32.totalorder %s24, %s25
    %p39 = scmp.eq.s32.totalorder %s17, 1
    %p40 = por %p38, %p39
    %p42 = scmp.ne.s32.totalorder %s25, %s41
    %p43 = scmp.eq.s32.totalorder %s17, 0
    %p44 = por %p42, %p43
    %s46 = sadd.s32 %s45, 1
    %p49 = scmp.eq.s32.totalorder %s11, 1
    %p50 = scmp.ne.s32.totalorder %s45, %s47
    %p51 = scmp.eq.s32.totalorder %s11, 0
    %p52 = por %p50, %p51
    %p53 = scmp.ne.s32.totalorder %s45, %s47
    %p54 = scmp.eq.s32.totalorder %s16, 1
    %p55 = por %p53, %p54
    %p56 = scmp.ne.s32.totalorder %s47, %s48
    %p57 = scmp.eq.s32.totalorder %s16, 0
    %p58 = por %p56, %p57
    %p59 = scmp.ne.s32.totalorder %s47, %s48
    %p60 = scmp.eq.s32.totalorder %s17, 1
    %p61 = por %p59, %p60
    %p63 = scmp.ne.s32.totalorder %s48, %s62
    %p64 = scmp.eq.s32.totalorder %s17, 0
    %p65 = por %p63, %p64
    %s67 = sadd.s32 %s66, 1
    %p70 = scmp.eq.s32.totalorder %s11, 1
    %p71 = scmp.ne.s32.totalorder %s66, %s68
    %p72 = scmp.eq.s32.totalorder %s11, 0
    %p73 = por %p71, %p72
    %p74 = scmp.ne.s32.totalorder %s66, %s68
    %p75 = scmp.eq.s32.totalorder %s16, 1
    %p76 = por %p74, %p75
    %p77 = scmp.ne.s32.totalorder %s68, %s69
    %p78 = scmp.eq.s32.totalorder %s16, 0
    %p79 = por %p77, %p78
    %p80 = scmp.ne.s32.totalorder %s68, %s69
    %p81 = scmp.eq.s32.totalorder %s17, 1
    %p82 = por %p80, %p81
    %p84 = scmp.ne.s32.totalorder %s69, %s83
    %p85 = scmp.eq.s32.totalorder %s17, 0
    %p86 = por %p84, %p85
    %s87 = ssub.s32 %s11, %s18
    %p88 = scmp.eq.s32.totalorder %s87, 0
    %s90 = sadd.s32 %s89, 1
    %s91 = scalar_select %p88, %s89, %s90
    %p94 = pneg %p88
    %p95 = scmp.eq.s32.totalorder %s11, 1
    %p96 = por %p94, %p95
    %p97 = scmp.ne.s32.totalorder %s89, %s92
    %p98 = scmp.eq.s32.totalorder %s11, 0
    %p99 = por %p97, %p98
    %p100 = scmp.ne.s32.totalorder %s89, %s92
    %p101 = scmp.eq.s32.totalorder %s16, 1
    %p102 = por %p100, %p101
    %p103 = scmp.ne.s32.totalorder %s92, %s93
    %p104 = scmp.eq.s32.totalorder %s16, 0
    %p105 = por %p103, %p104
    %p106 = scmp.ne.s32.totalorder %s92, %s93
    %p107 = scmp.eq.s32.totalorder %s17, 1
    %p108 = por %p106, %p107
    %p110 = scmp.ne.s32.totalorder %s93, %s109
    %p111 = scmp.eq.s32.totalorder %s17, 0
    %p112 = por %p110, %p111
    %s113 = ssub.s32 %s11, %s18
    %p114 = scmp.eq.s32.totalorder %s113, 0
    %s116 = sadd.s32 %s115, 1
    %s117 = scalar_select %p114, %s115, %s116
    %p120 = pneg %p114
    %p121 = scmp.eq.s32.totalorder %s11, 1
    %p122 = por %p120, %p121
    %p123 = scmp.ne.s32.totalorder %s115, %s118
    %p124 = scmp.eq.s32.totalorder %s11, 0
    %p125 = por %p123, %p124
    %p126 = scmp.ne.s32.totalorder %s115, %s118
    %p127 = scmp.eq.s32.totalorder %s16, 1
    %p128 = por %p126, %p127
    %p129 = scmp.ne.s32.totalorder %s118, %s119
    %p130 = scmp.eq.s32.totalorder %s16, 0
    %p131 = por %p129, %p130
    %p132 = scmp.ne.s32.totalorder %s118, %s119
    %p133 = scmp.eq.s32.totalorder %s17, 1
    %p134 = por %p132, %p133
    %p136 = scmp.ne.s32.totalorder %s119, %s135
    %p137 = scmp.eq.s32.totalorder %s17, 0
    %p138 = por %p136, %p137
    %p139 = scmp.le.s32.totalorder 1, %s11
    %p140 = scmp.lt.s32.totalorder %s11, 3
    %p141 = pnand %p139, %p140
    %p142 = pneg %p141
    // Predicated region
    $region9: #{detection_model_forward.2} parent=5 // pred_check
      _
    $region10: #{detection_model_forward.2} parent=5 // pred_check_branch
      %144 = sbr.rel (%p141) target = $region12
    $region11: #{detection_model_forward.2} parent=5 // pred_region
      %s145 = ssub.s32 %s11, 1
      // Predicated region
      $region13: #{detection_model_forward.2} parent=11 // pred_check
        %p146 = pneg %p58
      $region14: #{detection_model_forward.2} parent=11 // pred_check_branch
        %148 = sbr.rel (%p146) target = $region16
      $region15: #{detection_model_forward.2} parent=11 // pred_region
        _
      $region16: #{detection_model_forward.2} parent=11 // pred_fallthru
        _
      // Predicated region
      $region17: #{detection_model_forward.2} parent=11 // pred_check
        %p149 = pneg %p79
      $region18: #{detection_model_forward.2} parent=11 // pred_check_branch
        %151 = sbr.rel (%p149) target = $region20
      $region19: #{detection_model_forward.2} parent=11 // pred_region
        _
      $region20: #{detection_model_forward.2} parent=11 // pred_fallthru
        _
    $region12: #{detection_model_forward.2} parent=5 // pred_fallthru
      _
    %p152 = scmp.lt.s32.totalorder %s11, 2
    // Predicated region
    $region21: #{detection_model_forward.2} parent=5 // pred_check
      %p153 = pneg %p152
    $region22: #{detection_model_forward.2} parent=5 // pred_check_branch
      %155 = sbr.rel (%p153) target = $region24
    $region23: #{detection_model_forward.2} parent=5 // pred_region
      // Predicated region
      $region25: #{detection_model_forward.2} parent=23 // pred_check
        %p156 = pneg %p31
      $region26: #{detection_model_forward.2} parent=23 // pred_check_branch
        %158 = sbr.rel (%p156) target = $region28
      $region27: #{detection_model_forward.2} parent=23 // pred_region
        %s159 = smul.u32 64, %s11
        %p160 = scmp.lt.s32.totalorder %s159, 127
        %s161 = scalar_select %p160, %s159, 127
        %s162 = smul.addr %s161, 4
        %s163 = scalar_lea.vmem %s0, %s162
        %s164 = smul.u32 64, %s11
      $region28: #{detection_model_forward.2} parent=23 // pred_fallthru
        _
    $region24: #{detection_model_forward.2} parent=5 // pred_fallthru
      _
    %p165 = scmp.le.s32.totalorder 1, %s11
    %p166 = scmp.lt.s32.totalorder %s11, 3
    %p167 = pnand %p165, %p166
    %p168 = pneg %p167
    // Predicated region
    $region29: #{detection_model_forward.2} parent=5 // pred_check
      _
    $region30: #{detection_model_forward.2} parent=5 // pred_check_branch
      %170 = sbr.rel (%p167) target = $region32
    $region31: #{detection_model_forward.2} parent=5 // pred_region
      %s171 = ssub.s32 %s11, 1
      %s172 = smul.u32 64, %s16
      %p173 = scmp.lt.s32.totalorder %s172, 127
      %s174 = scalar_select %p173, %s172, 127
      %s175 = smul.addr %s174, 4
      %s176 = scalar_lea.vmem %s0, %s175
      %p177 = pneg %p37
      %p178 = pneg %p34
      %p179 = pneg %p58
      %p180 = pneg %p55
      %p181 = pneg %p79
      %p182 = pneg %p76
      %p183 = pneg %p105
      %p184 = pneg %p102
      %s185 = smul.u32 64, %s16
      %p186 = scmp.lt.s32.totalorder %s185, 127
      %s187 = scalar_select %p186, %s185, 127
      %s188 = smul.addr %s187, 4
      %s189 = scalar_lea.vmem %s3, %s188
      %p190 = pneg %p131
      %p191 = pneg %p128
      %s192 = smul.u32 64, %s16
      %p193 = scmp.lt.s32.totalorder %s192, 127
      %s194 = scalar_select %p193, %s192, 127
      %s195 = smul.addr %s194, 8
      %s196 = scalar_lea.vmem %s4, %s195
      %s197 = smul.u32 64, %s16
      %p198 = scmp.lt.s32.totalorder %s197, 127
      %s199 = scalar_select %p198, %s197, 127
      %s200 = smul.addr %s199, 4
      %s201 = scalar_lea.vmem %s0, %s200
      %s202 = smul.u32 64, %s16
      %s203 = smul.u32 64, %s16
      %p204 = scmp.lt.s32.totalorder %s203, 127
      %s205 = scalar_select %p204, %s203, 127
      %s206 = smul.addr %s205, 4
      %s207 = scalar_lea.vmem %s3, %s206
      %s208 = smul.u32 64, %s16
      %s209 = smul.u32 64, %s16
      %p210 = scmp.lt.s32.totalorder %s209, 127
      %s211 = scalar_select %p210, %s209, 127
      %s212 = smul.addr %s211, 8
      %s213 = scalar_lea.vmem %s4, %s212
      %s214 = smul.u32 64, %s16
      %v216 = vld [vmem:[%s201] sm:$0xf]
      %v217 = vld [vmem:[%s201 + $0x4] sm:$0xf]
      %v218 = vld [vmem:[%s201 + $0x8] sm:$0xf]
      %v219 = vld [vmem:[%s201 + $0xc] sm:$0xf]
      %v220 = vld [vmem:[%s201 + $0x10] sm:$0xf]
      %v221 = vld [vmem:[%s201 + $0x14] sm:$0xf]
      %v222 = vld [vmem:[%s201 + $0x18] sm:$0xf]
      %v223 = vld [vmem:[%s201 + $0x1c] sm:$0xf]
      %v224 = vld [vmem:[%s201 + $0x20] sm:$0xf]
      %v225 = vld [vmem:[%s201 + $0x24] sm:$0xf]
      %v226 = vld [vmem:[%s201 + $0x28] sm:$0xf]
      %v227 = vld [vmem:[%s201 + $0x2c] sm:$0xf]
      %v228 = vld [vmem:[%s201 + $0x30] sm:$0xf]
      %v229 = vld [vmem:[%s201 + $0x34] sm:$0xf]
      %v230 = vld [vmem:[%s201 + $0x38] sm:$0xf]
      %v231 = vld [vmem:[%s201 + $0x3c] sm:$0xf]
      %v232 = vld [vmem:[%s201 + $0x40] sm:$0xf]
      %v233 = vld [vmem:[%s201 + $0x44] sm:$0xf]
      %v234 = vld [vmem:[%s201 + $0x48] sm:$0xf]
      %v235 = vld [vmem:[%s201 + $0x4c] sm:$0xf]
      %v236 = vld [vmem:[%s201 + $0x50] sm:$0xf]
      %v237 = vld [vmem:[%s201 + $0x54] sm:$0xf]
      %v238 = vld [vmem:[%s201 + $0x58] sm:$0xf]
      %v239 = vld [vmem:[%s201 + $0x5c] sm:$0xf]
      %v240 = vld [vmem:[%s201 + $0x60] sm:$0xf]
      %v241 = vld [vmem:[%s201 + $0x64] sm:$0xf]
      %v242 = vld [vmem:[%s201 + $0x68] sm:$0xf]
      %v243 = vld [vmem:[%s201 + $0x6c] sm:$0xf]
      %v244 = vld [vmem:[%s201 + $0x70] sm:$0xf]
      %v245 = vld [vmem:[%s201 + $0x74] sm:$0xf]
      %v246 = vld [vmem:[%s201 + $0x78] sm:$0xf]
      %v247 = vld [vmem:[%s201 + $0x7c] sm:$0xf]
      %v248 = vld [vmem:[%s201 + $0x80] sm:$0xf]
      %v249 = vld [vmem:[%s201 + $0x84] sm:$0xf]
      %v250 = vld [vmem:[%s201 + $0x88] sm:$0xf]
      %v251 = vld [vmem:[%s201 + $0x8c] sm:$0xf]
      %v252 = vld [vmem:[%s201 + $0x90] sm:$0xf]
      %v253 = vld [vmem:[%s201 + $0x94] sm:$0xf]
      %v254 = vld [vmem:[%s201 + $0x98] sm:$0xf]
      %v255 = vld [vmem:[%s201 + $0x9c] sm:$0xf]
      %v256 = vld [vmem:[%s201 + $0xa0] sm:$0xf]
      %v257 = vld [vmem:[%s201 + $0xa4] sm:$0xf]
      %v258 = vld [vmem:[%s201 + $0xa8] sm:$0xf]
      %v259 = vld [vmem:[%s201 + $0xac] sm:$0xf]
      %v260 = vld [vmem:[%s201 + $0xb0] sm:$0xf]
      %v261 = vld [vmem:[%s201 + $0xb4] sm:$0xf]
      %v262 = vld [vmem:[%s201 + $0xb8] sm:$0xf]
      %v263 = vld [vmem:[%s201 + $0xbc] sm:$0xf]
      %v264 = vld [vmem:[%s201 + $0xc0] sm:$0xf]
      %v265 = vld [vmem:[%s201 + $0xc4] sm:$0xf]
      %v266 = vld [vmem:[%s201 + $0xc8] sm:$0xf]
      %v267 = vld [vmem:[%s201 + $0xcc] sm:$0xf]
      %v268 = vld [vmem:[%s201 + $0xd0] sm:$0xf]
      %v269 = vld [vmem:[%s201 + $0xd4] sm:$0xf]
      %v270 = vld [vmem:[%s201 + $0xd8] sm:$0xf]
      %v271 = vld [vmem:[%s201 + $0xdc] sm:$0xf]
      %v272 = vld [vmem:[%s201 + $0xe0] sm:$0xf]
      %v273 = vld [vmem:[%s201 + $0xe4] sm:$0xf]
      %v274 = vld [vmem:[%s201 + $0xe8] sm:$0xf]
      %v275 = vld [vmem:[%s201 + $0xec] sm:$0xf]
      %v276 = vld [vmem:[%s201 + $0xf0] sm:$0xf]
      %v277 = vld [vmem:[%s201 + $0xf4] sm:$0xf]
      %v278 = vld [vmem:[%s201 + $0xf8] sm:$0xf]
      %v279 = vld [vmem:[%s201 + $0xfc] sm:$0xf]
      %v280 = vld [vmem:[%s1] sm:$0x3]
      %v345 = vunpack.c.l.b16 %v216
      %v346 = vunpack.c.l.b16 %v217
      %v347 = vunpack.c.l.b16 %v218
      %v348 = vunpack.c.l.b16 %v219
      %v349 = vunpack.c.l.b16 %v220
      %v350 = vunpack.c.l.b16 %v221
      %v351 = vunpack.c.l.b16 %v222
      %v352 = vunpack.c.l.b16 %v223
      %v353 = vunpack.c.l.b16 %v224
      %v354 = vunpack.c.l.b16 %v225
      %v355 = vunpack.c.l.b16 %v226
      %v356 = vunpack.c.l.b16 %v227
      %v357 = vunpack.c.l.b16 %v228
      %v358 = vunpack.c.l.b16 %v229
      %v359 = vunpack.c.l.b16 %v230
      %v360 = vunpack.c.l.b16 %v231
      %v361 = vunpack.c.l.b16 %v232
      %v362 = vunpack.c.l.b16 %v233
      %v363 = vunpack.c.l.b16 %v234
      %v364 = vunpack.c.l.b16 %v235
      %v365 = vunpack.c.l.b16 %v236
      %v366 = vunpack.c.l.b16 %v237
      %v367 = vunpack.c.l.b16 %v238
      %v368 = vunpack.c.l.b16 %v239
      %v369 = vunpack.c.l.b16 %v240
      %v370 = vunpack.c.l.b16 %v241
      %v371 = vunpack.c.l.b16 %v242
      %v372 = vunpack.c.l.b16 %v243
      %v373 = vunpack.c.l.b16 %v244
      %v374 = vunpack.c.l.b16 %v245
      %v375 = vunpack.c.l.b16 %v246
      %v376 = vunpack.c.l.b16 %v247
      %v377 = vunpack.c.l.b16 %v248
      %v378 = vunpack.c.l.b16 %v249
      %v379 = vunpack.c.l.b16 %v250
      %v380 = vunpack.c.l.b16 %v251
      %v381 = vunpack.c.l.b16 %v252
      %v382 = vunpack.c.l.b16 %v253
      %v383 = vunpack.c.l.b16 %v254
      %v384 = vunpack.c.l.b16 %v255
      %v385 = vunpack.c.l.b16 %v256
      %v386 = vunpack.c.l.b16 %v257
      %v387 = vunpack.c.l.b16 %v258
      %v388 = vunpack.c.l.b16 %v259
      %v389 = vunpack.c.l.b16 %v260
      %v390 = vunpack.c.l.b16 %v261
      %v391 = vunpack.c.l.b16 %v262
      %v392 = vunpack.c.l.b16 %v263
      %v393 = vunpack.c.l.b16 %v264
      %v394 = vunpack.c.l.b16 %v265
      %v395 = vunpack.c.l.b16 %v266
      %v396 = vunpack.c.l.b16 %v267
      %v397 = vunpack.c.l.b16 %v268
      %v398 = vunpack.c.l.b16 %v269
      %v399 = vunpack.c.l.b16 %v270
      %v400 = vunpack.c.l.b16 %v271
      %v401 = vunpack.c.l.b16 %v272
      %v402 = vunpack.c.l.b16 %v273
      %v403 = vunpack.c.l.b16 %v274
      %v404 = vunpack.c.l.b16 %v275
      %v405 = vunpack.c.l.b16 %v276
      %v406 = vunpack.c.l.b16 %v277
      %v407 = vunpack.c.l.b16 %v278
      %v408 = vunpack.c.l.b16 %v279
      %v409 = vpack.c.b16 %v346, %v345
      %v410 = vpack.c.b16 %v348, %v347
      %v411 = vpack.c.b16 %v350, %v349
      %v412 = vpack.c.b16 %v352, %v351
      %v413 = vpack.c.b16 %v354, %v353
      %v414 = vpack.c.b16 %v356, %v355
      %v415 = vpack.c.b16 %v358, %v357
      %v416 = vpack.c.b16 %v360, %v359
      %v417 = vpack.c.b16 %v362, %v361
      %v418 = vpack.c.b16 %v364, %v363
      %v419 = vpack.c.b16 %v366, %v365
      %v420 = vpack.c.b16 %v368, %v367
      %v421 = vpack.c.b16 %v370, %v369
      %v422 = vpack.c.b16 %v372, %v371
      %v423 = vpack.c.b16 %v374, %v373
      %v424 = vpack.c.b16 %v376, %v375
      %v425 = vpack.c.b16 %v378, %v377
      %v426 = vpack.c.b16 %v380, %v379
      %v427 = vpack.c.b16 %v382, %v381
      %v428 = vpack.c.b16 %v384, %v383
      %v429 = vpack.c.b16 %v386, %v385
      %v430 = vpack.c.b16 %v388, %v387
      %v431 = vpack.c.b16 %v390, %v389
      %v432 = vpack.c.b16 %v392, %v391
      %v433 = vpack.c.b16 %v394, %v393
      %v434 = vpack.c.b16 %v396, %v395
      %v435 = vpack.c.b16 %v398, %v397
      %v436 = vpack.c.b16 %v400, %v399
      %v437 = vpack.c.b16 %v402, %v401
      %v438 = vpack.c.b16 %v404, %v403
      %v439 = vpack.c.b16 %v406, %v405
      %v440 = vpack.c.b16 %v408, %v407
      %vm441 = vcmask 31744
      %v443 = vsel %vm441, %v409, 0
      %v446 = vsel %vm441, %v410, 0
      %v449 = vsel %vm441, %v411, 0
      %v452 = vsel %vm441, %v412, 0
      %v455 = vsel %vm441, %v413, 0
      %v458 = vsel %vm441, %v414, 0
      %v461 = vsel %vm441, %v415, 0
      %v464 = vsel %vm441, %v416, 0
      %v467 = vsel %vm441, %v417, 0
      %v470 = vsel %vm441, %v418, 0
      %v473 = vsel %vm441, %v419, 0
      %v476 = vsel %vm441, %v420, 0
      %v479 = vsel %vm441, %v421, 0
      %v482 = vsel %vm441, %v422, 0
      %v485 = vsel %vm441, %v423, 0
      %v488 = vsel %vm441, %v424, 0
      %v491 = vsel %vm441, %v425, 0
      %v494 = vsel %vm441, %v426, 0
      %v497 = vsel %vm441, %v427, 0
      %v500 = vsel %vm441, %v428, 0
      %v503 = vsel %vm441, %v429, 0
      %v506 = vsel %vm441, %v430, 0
      %v509 = vsel %vm441, %v431, 0
      %v512 = vsel %vm441, %v432, 0
      %v515 = vsel %vm441, %v433, 0
      %v518 = vsel %vm441, %v434, 0
      %v521 = vsel %vm441, %v435, 0
      %v524 = vsel %vm441, %v436, 0
      %v527 = vsel %vm441, %v437, 0
      %v530 = vsel %vm441, %v438, 0
      %v533 = vsel %vm441, %v439, 0
      %v536 = vsel %vm441, %v440, 0
      %vm538 = vcmask 1041408
      %v540 = vsel %vm538, %v280, 0
      %542 = vmatpush.bf16.msra.mxu0 0
      %543 = vmatpush.bf16.msra.mxu0 0
      %544 = vmatpush.bf16.msra.mxu0 0
      %545 = vmatpush.bf16.msra.mxu0 0
      %546 = vmatpush.bf16.msra.mxu0 0
      %547 = vmatpush.bf16.msra.mxu0 0
      %548 = vmatpush.bf16.msra.mxu0 0
      %549 = vmatpush.bf16.msra.mxu0 %v540
      %550 = vmatmul.bf16.gmra.mxu0 %v443
      %v551 = vpop.f32.mrf.mxu0
      %v552 = vadd.f32 0.0, %v551
      %v553 = vpop.f32.mrf.mxu0
      %v554 = vadd.f32 0.0, %v553
      %555 = vmatmul.bf16.gmra.mxu0 %v446
      %v556 = vpop.f32.mrf.mxu0
      %v557 = vadd.f32 0.0, %v556
      %v558 = vpop.f32.mrf.mxu0
      %v559 = vadd.f32 0.0, %v558
      %560 = vmatmul.bf16.gmra.mxu0 %v449
      %v561 = vpop.f32.mrf.mxu0
      %v562 = vadd.f32 0.0, %v561
      %v563 = vpop.f32.mrf.mxu0
      %v564 = vadd.f32 0.0, %v563
      %565 = vmatmul.bf16.gmra.mxu0 %v452
      %v566 = vpop.f32.mrf.mxu0
      %v567 = vadd.f32 0.0, %v566
      %v568 = vpop.f32.mrf.mxu0
      %v569 = vadd.f32 0.0, %v568
      %570 = vmatmul.bf16.gmra.mxu0 %v455
      %v571 = vpop.f32.mrf.mxu0
      %v572 = vadd.f32 0.0, %v571
      %v573 = vpop.f32.mrf.mxu0
      %v574 = vadd.f32 0.0, %v573
      %575 = vmatmul.bf16.gmra.mxu0 %v458
      %v576 = vpop.f32.mrf.mxu0
      %v577 = vadd.f32 0.0, %v576
      %v578 = vpop.f32.mrf.mxu0
      %v579 = vadd.f32 0.0, %v578
      %580 = vmatmul.bf16.gmra.mxu0 %v461
      %v581 = vpop.f32.mrf.mxu0
      %v582 = vadd.f32 0.0, %v581
      %v583 = vpop.f32.mrf.mxu0
      %v584 = vadd.f32 0.0, %v583
      %585 = vmatmul.bf16.gmra.mxu0 %v464
      %v586 = vpop.f32.mrf.mxu0
      %v587 = vadd.f32 0.0, %v586
      %v588 = vpop.f32.mrf.mxu0
      %v589 = vadd.f32 0.0, %v588
      %590 = vmatmul.bf16.gmra.mxu0 %v467
      %v591 = vpop.f32.mrf.mxu0
      %v592 = vadd.f32 0.0, %v591
      %v593 = vpop.f32.mrf.mxu0
      %v594 = vadd.f32 0.0, %v593
      %595 = vmatmul.bf16.gmra.mxu0 %v470
      %v596 = vpop.f32.mrf.mxu0
      %v597 = vadd.f32 0.0, %v596
      %v598 = vpop.f32.mrf.mxu0
      %v599 = vadd.f32 0.0, %v598
      %600 = vmatmul.bf16.gmra.mxu0 %v473
      %v601 = vpop.f32.mrf.mxu0
      %v602 = vadd.f32 0.0, %v601
      %v603 = vpop.f32.mrf.mxu0
      %v604 = vadd.f32 0.0, %v603
      %605 = vmatmul.bf16.gmra.mxu0 %v476
      %v606 = vpop.f32.mrf.mxu0
      %v607 = vadd.f32 0.0, %v606
      %v608 = vpop.f32.mrf.mxu0
      %v609 = vadd.f32 0.0, %v608
      %610 = vmatmul.bf16.gmra.mxu0 %v479
      %v611 = vpop.f32.mrf.mxu0
      %v612 = vadd.f32 0.0, %v611
      %v613 = vpop.f32.mrf.mxu0
      %v614 = vadd.f32 0.0, %v613
      %615 = vmatmul.bf16.gmra.mxu0 %v482
      %v616 = vpop.f32.mrf.mxu0
      %v617 = vadd.f32 0.0, %v616
      %v618 = vpop.f32.mrf.mxu0
      %v619 = vadd.f32 0.0, %v618
      %620 = vmatmul.bf16.gmra.mxu0 %v485
      %v621 = vpop.f32.mrf.mxu0
      %v622 = vadd.f32 0.0, %v621
      %v623 = vpop.f32.mrf.mxu0
      %v624 = vadd.f32 0.0, %v623
      %625 = vmatmul.bf16.gmra.mxu0 %v488
      %v626 = vpop.f32.mrf.mxu0
      %v627 = vadd.f32 0.0, %v626
      %v628 = vpop.f32.mrf.mxu0
      %v629 = vadd.f32 0.0, %v628
      %630 = vmatmul.bf16.gmra.mxu0 %v491
      %v631 = vpop.f32.mrf.mxu0
      %v632 = vadd.f32 0.0, %v631
      %v633 = vpop.f32.mrf.mxu0
      %v634 = vadd.f32 0.0, %v633
      %635 = vmatmul.bf16.gmra.mxu0 %v494
      %v636 = vpop.f32.mrf.mxu0
      %v637 = vadd.f32 0.0, %v636
      %v638 = vpop.f32.mrf.mxu0
      %v639 = vadd.f32 0.0, %v638
      %640 = vmatmul.bf16.gmra.mxu0 %v497
      %v641 = vpop.f32.mrf.mxu0
      %v642 = vadd.f32 0.0, %v641
      %v643 = vpop.f32.mrf.mxu0
      %v644 = vadd.f32 0.0, %v643
      %645 = vmatmul.bf16.gmra.mxu0 %v500
      %v646 = vpop.f32.mrf.mxu0
      %v647 = vadd.f32 0.0, %v646
      %v648 = vpop.f32.mrf.mxu0
      %v649 = vadd.f32 0.0, %v648
      %650 = vmatmul.bf16.gmra.mxu0 %v503
      %v651 = vpop.f32.mrf.mxu0
      %v652 = vadd.f32 0.0, %v651
      %v653 = vpop.f32.mrf.mxu0
      %v654 = vadd.f32 0.0, %v653
      %655 = vmatmul.bf16.gmra.mxu0 %v506
      %v656 = vpop.f32.mrf.mxu0
      %v657 = vadd.f32 0.0, %v656
      %v658 = vpop.f32.mrf.mxu0
      %v659 = vadd.f32 0.0, %v658
      %660 = vmatmul.bf16.gmra.mxu0 %v509
      %v661 = vpop.f32.mrf.mxu0
      %v662 = vadd.f32 0.0, %v661
      %v663 = vpop.f32.mrf.mxu0
      %v664 = vadd.f32 0.0, %v663
      %665 = vmatmul.bf16.gmra.mxu0 %v512
      %v666 = vpop.f32.mrf.mxu0
      %v667 = vadd.f32 0.0, %v666
      %v668 = vpop.f32.mrf.mxu0
      %v669 = vadd.f32 0.0, %v668
      %670 = vmatmul.bf16.gmra.mxu0 %v515
      %v671 = vpop.f32.mrf.mxu0
      %v672 = vadd.f32 0.0, %v671
      %v673 = vpop.f32.mrf.mxu0
      %v674 = vadd.f32 0.0, %v673
      %675 = vmatmul.bf16.gmra.mxu0 %v518
      %v676 = vpop.f32.mrf.mxu0
      %v677 = vadd.f32 0.0, %v676
      %v678 = vpop.f32.mrf.mxu0
      %v679 = vadd.f32 0.0, %v678
      %680 = vmatmul.bf16.gmra.mxu0 %v521
      %v681 = vpop.f32.mrf.mxu0
      %v682 = vadd.f32 0.0, %v681
      %v683 = vpop.f32.mrf.mxu0
      %v684 = vadd.f32 0.0, %v683
      %685 = vmatmul.bf16.gmra.mxu0 %v524
      %v686 = vpop.f32.mrf.mxu0
      %v687 = vadd.f32 0.0, %v686
      %v688 = vpop.f32.mrf.mxu0
      %v689 = vadd.f32 0.0, %v688
      %690 = vmatmul.bf16.gmra.mxu0 %v527
      %v691 = vpop.f32.mrf.mxu0
      %v692 = vadd.f32 0.0, %v691
      %v693 = vpop.f32.mrf.mxu0
      %v694 = vadd.f32 0.0, %v693
      %695 = vmatmul.bf16.gmra.mxu0 %v530
      %v696 = vpop.f32.mrf.mxu0
      %v697 = vadd.f32 0.0, %v696
      %v698 = vpop.f32.mrf.mxu0
      %v699 = vadd.f32 0.0, %v698
      %700 = vmatmul.bf16.gmra.mxu0 %v533
      %v701 = vpop.f32.mrf.mxu0
      %v702 = vadd.f32 0.0, %v701
      %v703 = vpop.f32.mrf.mxu0
      %v704 = vadd.f32 0.0, %v703
      %705 = vmatmul.bf16.gmra.mxu0 %v536
      %v706 = vpop.f32.mrf.mxu0
      %v707 = vadd.f32 0.0, %v706
      %v708 = vpop.f32.mrf.mxu0
      %v709 = vadd.f32 0.0, %v708
      %710 = vdwg.mxu0
      %v711 = vmax.f32 %v552, 0.0
      %v712 = vmax.f32 %v554, 0.0
      %v713 = vmax.f32 %v557, 0.0
      %v714 = vmax.f32 %v559, 0.0
      %v715 = vmax.f32 %v562, 0.0
      %v716 = vmax.f32 %v564, 0.0
      %v717 = vmax.f32 %v567, 0.0
      %v718 = vmax.f32 %v569, 0.0
      %v719 = vmax.f32 %v572, 0.0
      %v720 = vmax.f32 %v574, 0.0
      %v721 = vmax.f32 %v577, 0.0
      %v722 = vmax.f32 %v579, 0.0
      %v723 = vmax.f32 %v582, 0.0
      %v724 = vmax.f32 %v584, 0.0
      %v725 = vmax.f32 %v587, 0.0
      %v726 = vmax.f32 %v589, 0.0
      %v727 = vmax.f32 %v592, 0.0
      %v728 = vmax.f32 %v594, 0.0
      %v729 = vmax.f32 %v597, 0.0
      %v730 = vmax.f32 %v599, 0.0
      %v731 = vmax.f32 %v602, 0.0
      %v732 = vmax.f32 %v604, 0.0
      %v733 = vmax.f32 %v607, 0.0
      %v734 = vmax.f32 %v609, 0.0
      %v735 = vmax.f32 %v612, 0.0
      %v736 = vmax.f32 %v614, 0.0
      %v737 = vmax.f32 %v617, 0.0
      %v738 = vmax.f32 %v619, 0.0
      %v739 = vmax.f32 %v622, 0.0
      %v740 = vmax.f32 %v624, 0.0
      %v741 = vmax.f32 %v627, 0.0
      %v742 = vmax.f32 %v629, 0.0
      %v743 = vmax.f32 %v632, 0.0
      %v744 = vmax.f32 %v634, 0.0
      %v745 = vmax.f32 %v637, 0.0
      %v746 = vmax.f32 %v639, 0.0
      %v747 = vmax.f32 %v642, 0.0
      %v748 = vmax.f32 %v644, 0.0
      %v749 = vmax.f32 %v647, 0.0
      %v750 = vmax.f32 %v649, 0.0
      %v751 = vmax.f32 %v652, 0.0
      %v752 = vmax.f32 %v654, 0.0
      %v753 = vmax.f32 %v657, 0.0
      %v754 = vmax.f32 %v659, 0.0
      %v755 = vmax.f32 %v662, 0.0
      %v756 = vmax.f32 %v664, 0.0
      %v757 = vmax.f32 %v667, 0.0
      %v758 = vmax.f32 %v669, 0.0
      %v759 = vmax.f32 %v672, 0.0
      %v760 = vmax.f32 %v674, 0.0
      %v761 = vmax.f32 %v677, 0.0
      %v762 = vmax.f32 %v679, 0.0
      %v763 = vmax.f32 %v682, 0.0
      %v764 = vmax.f32 %v684, 0.0
      %v765 = vmax.f32 %v687, 0.0
      %v766 = vmax.f32 %v689, 0.0
      %v767 = vmax.f32 %v692, 0.0
      %v768 = vmax.f32 %v694, 0.0
      %v769 = vmax.f32 %v697, 0.0
      %v770 = vmax.f32 %v699, 0.0
      %v771 = vmax.f32 %v702, 0.0
      %v772 = vmax.f32 %v704, 0.0
      %v773 = vmax.f32 %v707, 0.0
      %v774 = vmax.f32 %v709, 0.0
      %v775 = vpack.c.bf16 %v711, %v711
      %v776 = vpack.c.bf16 %v712, %v712
      %v777 = vpack.c.bf16 %v713, %v713
      %v778 = vpack.c.bf16 %v714, %v714
      %v779 = vpack.c.bf16 %v715, %v715
      %v780 = vpack.c.bf16 %v716, %v716
      %v781 = vpack.c.bf16 %v717, %v717
      %v782 = vpack.c.bf16 %v718, %v718
      %v783 = vpack.c.bf16 %v719, %v719
      %v784 = vpack.c.bf16 %v720, %v720
      %v785 = vpack.c.bf16 %v721, %v721
      %v786 = vpack.c.bf16 %v722, %v722
      %v787 = vpack.c.bf16 %v723, %v723
      %v788 = vpack.c.bf16 %v724, %v724
      %v789 = vpack.c.bf16 %v725, %v725
      %v790 = vpack.c.bf16 %v726, %v726
      %v791 = vpack.c.bf16 %v727, %v727
      %v792 = vpack.c.bf16 %v728, %v728
      %v793 = vpack.c.bf16 %v729, %v729
      %v794 = vpack.c.bf16 %v730, %v730
      %v795 = vpack.c.bf16 %v731, %v731
      %v796 = vpack.c.bf16 %v732, %v732
      %v797 = vpack.c.bf16 %v733, %v733
      %v798 = vpack.c.bf16 %v734, %v734
      %v799 = vpack.c.bf16 %v735, %v735
      %v800 = vpack.c.bf16 %v736, %v736
      %v801 = vpack.c.bf16 %v737, %v737
      %v802 = vpack.c.bf16 %v738, %v738
      %v803 = vpack.c.bf16 %v739, %v739
      %v804 = vpack.c.bf16 %v740, %v740
      %v805 = vpack.c.bf16 %v741, %v741
      %v806 = vpack.c.bf16 %v742, %v742
      %v807 = vpack.c.bf16 %v743, %v743
      %v808 = vpack.c.bf16 %v744, %v744
      %v809 = vpack.c.bf16 %v745, %v745
      %v810 = vpack.c.bf16 %v746, %v746
      %v811 = vpack.c.bf16 %v747, %v747
      %v812 = vpack.c.bf16 %v748, %v748
      %v813 = vpack.c.bf16 %v749, %v749
      %v814 = vpack.c.bf16 %v750, %v750
      %v815 = vpack.c.bf16 %v751, %v751
      %v816 = vpack.c.bf16 %v752, %v752
      %v817 = vpack.c.bf16 %v753, %v753
      %v818 = vpack.c.bf16 %v754, %v754
      %v819 = vpack.c.bf16 %v755, %v755
      %v820 = vpack.c.bf16 %v756, %v756
      %v821 = vpack.c.bf16 %v757, %v757
      %v822 = vpack.c.bf16 %v758, %v758
      %v823 = vpack.c.bf16 %v759, %v759
      %v824 = vpack.c.bf16 %v760, %v760
      %v825 = vpack.c.bf16 %v761, %v761
      %v826 = vpack.c.bf16 %v762, %v762
      %v827 = vpack.c.bf16 %v763, %v763
      %v828 = vpack.c.bf16 %v764, %v764
      %v829 = vpack.c.bf16 %v765, %v765
      %v830 = vpack.c.bf16 %v766, %v766
      %v831 = vpack.c.bf16 %v767, %v767
      %v832 = vpack.c.bf16 %v768, %v768
      %v833 = vpack.c.bf16 %v769, %v769
      %v834 = vpack.c.bf16 %v770, %v770
      %v835 = vpack.c.bf16 %v771, %v771
      %v836 = vpack.c.bf16 %v772, %v772
      %v837 = vpack.c.bf16 %v773, %v773
      %v838 = vpack.c.bf16 %v774, %v774
      %vm839 = vcmask 355328
      %840 = vst.msk [vmem:[%s207] sm:$0xf] %vm839, %v775
      %841 = vst.msk [vmem:[%s207 + $0x4] sm:$0xf] %vm839, %v776
      %842 = vst.msk [vmem:[%s207 + $0x8] sm:$0xf] %vm839, %v777
      %843 = vst.msk [vmem:[%s207 + $0xc] sm:$0xf] %vm839, %v778
      %844 = vst.msk [vmem:[%s207 + $0x10] sm:$0xf] %vm839, %v779
      %845 = vst.msk [vmem:[%s207 + $0x14] sm:$0xf] %vm839, %v780
      %846 = vst.msk [vmem:[%s207 + $0x18] sm:$0xf] %vm839, %v781
      %847 = vst.msk [vmem:[%s207 + $0x1c] sm:$0xf] %vm839, %v782
      %848 = vst.msk [vmem:[%s207 + $0x20] sm:$0xf] %vm839, %v783
      %849 = vst.msk [vmem:[%s207 + $0x24] sm:$0xf] %vm839, %v784
      %850 = vst.msk [vmem:[%s207 + $0x28] sm:$0xf] %vm839, %v785
      %851 = vst.msk [vmem:[%s207 + $0x2c] sm:$0xf] %vm839, %v786
      %852 = vst.msk [vmem:[%s207 + $0x30] sm:$0xf] %vm839, %v787
      %853 = vst.msk [vmem:[%s207 + $0x34] sm:$0xf] %vm839, %v788
      %854 = vst.msk [vmem:[%s207 + $0x38] sm:$0xf] %vm839, %v789
      %855 = vst.msk [vmem:[%s207 + $0x3c] sm:$0xf] %vm839, %v790
      %856 = vst.msk [vmem:[%s207 + $0x40] sm:$0xf] %vm839, %v791
      %857 = vst.msk [vmem:[%s207 + $0x44] sm:$0xf] %vm839, %v792
      %858 = vst.msk [vmem:[%s207 + $0x48] sm:$0xf] %vm839, %v793
      %859 = vst.msk [vmem:[%s207 + $0x4c] sm:$0xf] %vm839, %v794
      %860 = vst.msk [vmem:[%s207 + $0x50] sm:$0xf] %vm839, %v795
      %861 = vst.msk [vmem:[%s207 + $0x54] sm:$0xf] %vm839, %v796
      %862 = vst.msk [vmem:[%s207 + $0x58] sm:$0xf] %vm839, %v797
      %863 = vst.msk [vmem:[%s207 + $0x5c] sm:$0xf] %vm839, %v798
      %864 = vst.msk [vmem:[%s207 + $0x60] sm:$0xf] %vm839, %v799
      %865 = vst.msk [vmem:[%s207 + $0x64] sm:$0xf] %vm839, %v800
      %866 = vst.msk [vmem:[%s207 + $0x68] sm:$0xf] %vm839, %v801
      %867 = vst.msk [vmem:[%s207 + $0x6c] sm:$0xf] %vm839, %v802
      %868 = vst.msk [vmem:[%s207 + $0x70] sm:$0xf] %vm839, %v803
      %869 = vst.msk [vmem:[%s207 + $0x74] sm:$0xf] %vm839, %v804
      %870 = vst.msk [vmem:[%s207 + $0x78] sm:$0xf] %vm839, %v805
      %871 = vst.msk [vmem:[%s207 + $0x7c] sm:$0xf] %vm839, %v806
      %872 = vst.msk [vmem:[%s207 + $0x80] sm:$0xf] %vm839, %v807
      %873 = vst.msk [vmem:[%s207 + $0x84] sm:$0xf] %vm839, %v808
      %874 = vst.msk [vmem:[%s207 + $0x88] sm:$0xf] %vm839, %v809
      %875 = vst.msk [vmem:[%s207 + $0x8c] sm:$0xf] %vm839, %v810
      %876 = vst.msk [vmem:[%s207 + $0x90] sm:$0xf] %vm839, %v811
      %877 = vst.msk [vmem:[%s207 + $0x94] sm:$0xf] %vm839, %v812
      %878 = vst.msk [vmem:[%s207 + $0x98] sm:$0xf] %vm839, %v813
      %879 = vst.msk [vmem:[%s207 + $0x9c] sm:$0xf] %vm839, %v814
      %880 = vst.msk [vmem:[%s207 + $0xa0] sm:$0xf] %vm839, %v815
      %881 = vst.msk [vmem:[%s207 + $0xa4] sm:$0xf] %vm839, %v816
      %882 = vst.msk [vmem:[%s207 + $0xa8] sm:$0xf] %vm839, %v817
      %883 = vst.msk [vmem:[%s207 + $0xac] sm:$0xf] %vm839, %v818
      %884 = vst.msk [vmem:[%s207 + $0xb0] sm:$0xf] %vm839, %v819
      %885 = vst.msk [vmem:[%s207 + $0xb4] sm:$0xf] %vm839, %v820
      %886 = vst.msk [vmem:[%s207 + $0xb8] sm:$0xf] %vm839, %v821
      %887 = vst.msk [vmem:[%s207 + $0xbc] sm:$0xf] %vm839, %v822
      %888 = vst.msk [vmem:[%s207 + $0xc0] sm:$0xf] %vm839, %v823
      %889 = vst.msk [vmem:[%s207 + $0xc4] sm:$0xf] %vm839, %v824
      %890 = vst.msk [vmem:[%s207 + $0xc8] sm:$0xf] %vm839, %v825
      %891 = vst.msk [vmem:[%s207 + $0xcc] sm:$0xf] %vm839, %v826
      %892 = vst.msk [vmem:[%s207 + $0xd0] sm:$0xf] %vm839, %v827
      %893 = vst.msk [vmem:[%s207 + $0xd4] sm:$0xf] %vm839, %v828
      %894 = vst.msk [vmem:[%s207 + $0xd8] sm:$0xf] %vm839, %v829
      %895 = vst.msk [vmem:[%s207 + $0xdc] sm:$0xf] %vm839, %v830
      %896 = vst.msk [vmem:[%s207 + $0xe0] sm:$0xf] %vm839, %v831
      %897 = vst.msk [vmem:[%s207 + $0xe4] sm:$0xf] %vm839, %v832
      %898 = vst.msk [vmem:[%s207 + $0xe8] sm:$0xf] %vm839, %v833
      %899 = vst.msk [vmem:[%s207 + $0xec] sm:$0xf] %vm839, %v834
      %900 = vst.msk [vmem:[%s207 + $0xf0] sm:$0xf] %vm839, %v835
      %901 = vst.msk [vmem:[%s207 + $0xf4] sm:$0xf] %vm839, %v836
      %902 = vst.msk [vmem:[%s207 + $0xf8] sm:$0xf] %vm839, %v837
      %903 = vst.msk [vmem:[%s207 + $0xfc] sm:$0xf] %vm839, %v838
      %v904 = vld [vmem:[%s2] sm:$0xf]
      %v905 = vld [vmem:[%s2 + $0x4] sm:$0xf]
      %v906 = vld [vmem:[%s2 + $0x8] sm:$0xf]
      %v907 = vld [vmem:[%s2 + $0xc] sm:$0xf]
      %v908 = vld [vmem:[%s2 + $0x10] sm:$0xf]
      %v909 = vld [vmem:[%s2 + $0x14] sm:$0x3]
      %v974 = vunpack.c.l.b16 %v775
      %v975 = vunpack.c.l.b16 %v776
      %v976 = vunpack.c.l.b16 %v777
      %v977 = vunpack.c.l.b16 %v778
      %v978 = vunpack.c.l.b16 %v779
      %v979 = vunpack.c.l.b16 %v780
      %v980 = vunpack.c.l.b16 %v781
      %v981 = vunpack.c.l.b16 %v782
      %v982 = vunpack.c.l.b16 %v783
      %v983 = vunpack.c.l.b16 %v784
      %v984 = vunpack.c.l.b16 %v785
      %v985 = vunpack.c.l.b16 %v786
      %v986 = vunpack.c.l.b16 %v787
      %v987 = vunpack.c.l.b16 %v788
      %v988 = vunpack.c.l.b16 %v789
      %v989 = vunpack.c.l.b16 %v790
      %v990 = vunpack.c.l.b16 %v791
      %v991 = vunpack.c.l.b16 %v792
      %v992 = vunpack.c.l.b16 %v793
      %v993 = vunpack.c.l.b16 %v794
      %v994 = vunpack.c.l.b16 %v795
      %v995 = vunpack.c.l.b16 %v796
      %v996 = vunpack.c.l.b16 %v797
      %v997 = vunpack.c.l.b16 %v798
      %v998 = vunpack.c.l.b16 %v799
      %v999 = vunpack.c.l.b16 %v800
      %v1000 = vunpack.c.l.b16 %v801
      %v1001 = vunpack.c.l.b16 %v802
      %v1002 = vunpack.c.l.b16 %v803
      %v1003 = vunpack.c.l.b16 %v804
      %v1004 = vunpack.c.l.b16 %v805
      %v1005 = vunpack.c.l.b16 %v806
      %v1006 = vunpack.c.l.b16 %v807
      %v1007 = vunpack.c.l.b16 %v808
      %v1008 = vunpack.c.l.b16 %v809
      %v1009 = vunpack.c.l.b16 %v810
      %v1010 = vunpack.c.l.b16 %v811
      %v1011 = vunpack.c.l.b16 %v812
      %v1012 = vunpack.c.l.b16 %v813
      %v1013 = vunpack.c.l.b16 %v814
      %v1014 = vunpack.c.l.b16 %v815
      %v1015 = vunpack.c.l.b16 %v816
      %v1016 = vunpack.c.l.b16 %v817
      %v1017 = vunpack.c.l.b16 %v818
      %v1018 = vunpack.c.l.b16 %v819
      %v1019 = vunpack.c.l.b16 %v820
      %v1020 = vunpack.c.l.b16 %v821
      %v1021 = vunpack.c.l.b16 %v822
      %v1022 = vunpack.c.l.b16 %v823
      %v1023 = vunpack.c.l.b16 %v824
      %v1024 = vunpack.c.l.b16 %v825
      %v1025 = vunpack.c.l.b16 %v826
      %v1026 = vunpack.c.l.b16 %v827
      %v1027 = vunpack.c.l.b16 %v828
      %v1028 = vunpack.c.l.b16 %v829
      %v1029 = vunpack.c.l.b16 %v830
      %v1030 = vunpack.c.l.b16 %v831
      %v1031 = vunpack.c.l.b16 %v832
      %v1032 = vunpack.c.l.b16 %v833
      %v1033 = vunpack.c.l.b16 %v834
      %v1034 = vunpack.c.l.b16 %v835
      %v1035 = vunpack.c.l.b16 %v836
      %v1036 = vunpack.c.l.b16 %v837
      %v1037 = vunpack.c.l.b16 %v838
      %v1038 = vpack.c.b16 %v975, %v974
      %v1039 = vpack.c.b16 %v977, %v976
      %v1040 = vpack.c.b16 %v979, %v978
      %v1041 = vpack.c.b16 %v981, %v980
      %v1042 = vpack.c.b16 %v983, %v982
      %v1043 = vpack.c.b16 %v985, %v984
      %v1044 = vpack.c.b16 %v987, %v986
      %v1045 = vpack.c.b16 %v989, %v988
      %v1046 = vpack.c.b16 %v991, %v990
      %v1047 = vpack.c.b16 %v993, %v992
      %v1048 = vpack.c.b16 %v995, %v994
      %v1049 = vpack.c.b16 %v997, %v996
      %v1050 = vpack.c.b16 %v999, %v998
      %v1051 = vpack.c.b16 %v1001, %v1000
      %v1052 = vpack.c.b16 %v1003, %v1002
      %v1053 = vpack.c.b16 %v1005, %v1004
      %v1054 = vpack.c.b16 %v1007, %v1006
      %v1055 = vpack.c.b16 %v1009, %v1008
      %v1056 = vpack.c.b16 %v1011, %v1010
      %v1057 = vpack.c.b16 %v1013, %v1012
      %v1058 = vpack.c.b16 %v1015, %v1014
      %v1059 = vpack.c.b16 %v1017, %v1016
      %v1060 = vpack.c.b16 %v1019, %v1018
      %v1061 = vpack.c.b16 %v1021, %v1020
      %v1062 = vpack.c.b16 %v1023, %v1022
      %v1063 = vpack.c.b16 %v1025, %v1024
      %v1064 = vpack.c.b16 %v1027, %v1026
      %v1065 = vpack.c.b16 %v1029, %v1028
      %v1066 = vpack.c.b16 %v1031, %v1030
      %v1067 = vpack.c.b16 %v1033, %v1032
      %v1068 = vpack.c.b16 %v1035, %v1034
      %v1069 = vpack.c.b16 %v1037, %v1036
      %v1076 = vunpack.c.l.b16 %v904
      %v1077 = vunpack.c.l.b16 %v905
      %v1078 = vunpack.c.l.b16 %v906
      %v1079 = vunpack.c.l.b16 %v907
      %v1080 = vunpack.c.l.b16 %v908
      %v1081 = vunpack.c.l.b16 %v909
      %v1082 = vpack.c.b16 %v1077, %v1076
      %v1083 = vpack.c.b16 %v1079, %v1078
      %v1084 = vpack.c.b16 %v1081, %v1080
      %vm1087 = vcmask 359424
      %v1089 = vsel %vm1087, %v1038, 0
      %v1092 = vsel %vm1087, %v1039, 0
      %v1095 = vsel %vm1087, %v1040, 0
      %v1098 = vsel %vm1087, %v1041, 0
      %v1101 = vsel %vm1087, %v1042, 0
      %v1104 = vsel %vm1087, %v1043, 0
      %v1107 = vsel %vm1087, %v1044, 0
      %v1110 = vsel %vm1087, %v1045, 0
      %v1113 = vsel %vm1087, %v1046, 0
      %v1116 = vsel %vm1087, %v1047, 0
      %v1119 = vsel %vm1087, %v1048, 0
      %v1122 = vsel %vm1087, %v1049, 0
      %v1125 = vsel %vm1087, %v1050, 0
      %v1128 = vsel %vm1087, %v1051, 0
      %v1131 = vsel %vm1087, %v1052, 0
      %v1134 = vsel %vm1087, %v1053, 0
      %v1137 = vsel %vm1087, %v1054, 0
      %v1140 = vsel %vm1087, %v1055, 0
      %v1143 = vsel %vm1087, %v1056, 0
      %v1146 = vsel %vm1087, %v1057, 0
      %v1149 = vsel %vm1087, %v1058, 0
      %v1152 = vsel %vm1087, %v1059, 0
      %v1155 = vsel %vm1087, %v1060, 0
      %v1158 = vsel %vm1087, %v1061, 0
      %v1161 = vsel %vm1087, %v1062, 0
      %v1164 = vsel %vm1087, %v1063, 0
      %v1167 = vsel %vm1087, %v1064, 0
      %v1170 = vsel %vm1087, %v1065, 0
      %v1173 = vsel %vm1087, %v1066, 0
      %v1176 = vsel %vm1087, %v1067, 0
      %v1179 = vsel %vm1087, %v1068, 0
      %v1182 = vsel %vm1087, %v1069, 0
      %vm1184 = vcmask 1045504
      %v1186 = vsel %vm1184, %v1084, 0
      %1188 = vmatpush.bf16.msra.mxu0 0
      %1189 = vmatpush.bf16.msra.mxu0 0
      %1190 = vmatpush.bf16.msra.mxu0 0
      %1191 = vmatpush.bf16.msra.mxu0 0
      %1192 = vmatpush.bf16.msra.mxu0 0
      %1193 = vmatpush.bf16.msra.mxu0 %v1186
      %1194 = vmatpush.bf16.msra.mxu0 %v1083
      %1195 = vmatpush.bf16.msra.mxu0 %v1082
      %1196 = vmatmul.bf16.gmra.mxu0 %v1089
      %v1197 = vpop.f32.mrf.mxu0
      %v1198 = vadd.f32 0.0, %v1197
      %v1199 = vpop.f32.mrf.mxu0
      %v1200 = vadd.f32 0.0, %v1199
      %1201 = vmatmul.bf16.gmra.mxu0 %v1092
      %v1202 = vpop.f32.mrf.mxu0
      %v1203 = vadd.f32 0.0, %v1202
      %v1204 = vpop.f32.mrf.mxu0
      %v1205 = vadd.f32 0.0, %v1204
      %1206 = vmatmul.bf16.gmra.mxu0 %v1095
      %v1207 = vpop.f32.mrf.mxu0
      %v1208 = vadd.f32 0.0, %v1207
      %v1209 = vpop.f32.mrf.mxu0
      %v1210 = vadd.f32 0.0, %v1209
      %1211 = vmatmul.bf16.gmra.mxu0 %v1098
      %v1212 = vpop.f32.mrf.mxu0
      %v1213 = vadd.f32 0.0, %v1212
      %v1214 = vpop.f32.mrf.mxu0
      %v1215 = vadd.f32 0.0, %v1214
      %1216 = vmatmul.bf16.gmra.mxu0 %v1101
      %v1217 = vpop.f32.mrf.mxu0
      %v1218 = vadd.f32 0.0, %v1217
      %v1219 = vpop.f32.mrf.mxu0
      %v1220 = vadd.f32 0.0, %v1219
      %1221 = vmatmul.bf16.gmra.mxu0 %v1104
      %v1222 = vpop.f32.mrf.mxu0
      %v1223 = vadd.f32 0.0, %v1222
      %v1224 = vpop.f32.mrf.mxu0
      %v1225 = vadd.f32 0.0, %v1224
      %1226 = vmatmul.bf16.gmra.mxu0 %v1107
      %v1227 = vpop.f32.mrf.mxu0
      %v1228 = vadd.f32 0.0, %v1227
      %v1229 = vpop.f32.mrf.mxu0
      %v1230 = vadd.f32 0.0, %v1229
      %1231 = vmatmul.bf16.gmra.mxu0 %v1110
      %v1232 = vpop.f32.mrf.mxu0
      %v1233 = vadd.f32 0.0, %v1232
      %v1234 = vpop.f32.mrf.mxu0
      %v1235 = vadd.f32 0.0, %v1234
      %1236 = vmatmul.bf16.gmra.mxu0 %v1113
      %v1237 = vpop.f32.mrf.mxu0
      %v1238 = vadd.f32 0.0, %v1237
      %v1239 = vpop.f32.mrf.mxu0
      %v1240 = vadd.f32 0.0, %v1239
      %1241 = vmatmul.bf16.gmra.mxu0 %v1116
      %v1242 = vpop.f32.mrf.mxu0
      %v1243 = vadd.f32 0.0, %v1242
      %v1244 = vpop.f32.mrf.mxu0
      %v1245 = vadd.f32 0.0, %v1244
      %1246 = vmatmul.bf16.gmra.mxu0 %v1119
      %v1247 = vpop.f32.mrf.mxu0
      %v1248 = vadd.f32 0.0, %v1247
      %v1249 = vpop.f32.mrf.mxu0
      %v1250 = vadd.f32 0.0, %v1249
      %1251 = vmatmul.bf16.gmra.mxu0 %v1122
      %v1252 = vpop.f32.mrf.mxu0
      %v1253 = vadd.f32 0.0, %v1252
      %v1254 = vpop.f32.mrf.mxu0
      %v1255 = vadd.f32 0.0, %v1254
      %1256 = vmatmul.bf16.gmra.mxu0 %v1125
      %v1257 = vpop.f32.mrf.mxu0
      %v1258 = vadd.f32 0.0, %v1257
      %v1259 = vpop.f32.mrf.mxu0
      %v1260 = vadd.f32 0.0, %v1259
      %1261 = vmatmul.bf16.gmra.mxu0 %v1128
      %v1262 = vpop.f32.mrf.mxu0
      %v1263 = vadd.f32 0.0, %v1262
      %v1264 = vpop.f32.mrf.mxu0
      %v1265 = vadd.f32 0.0, %v1264
      %1266 = vmatmul.bf16.gmra.mxu0 %v1131
      %v1267 = vpop.f32.mrf.mxu0
      %v1268 = vadd.f32 0.0, %v1267
      %v1269 = vpop.f32.mrf.mxu0
      %v1270 = vadd.f32 0.0, %v1269
      %1271 = vmatmul.bf16.gmra.mxu0 %v1134
      %v1272 = vpop.f32.mrf.mxu0
      %v1273 = vadd.f32 0.0, %v1272
      %v1274 = vpop.f32.mrf.mxu0
      %v1275 = vadd.f32 0.0, %v1274
      %1276 = vmatmul.bf16.gmra.mxu0 %v1137
      %v1277 = vpop.f32.mrf.mxu0
      %v1278 = vadd.f32 0.0, %v1277
      %v1279 = vpop.f32.mrf.mxu0
      %v1280 = vadd.f32 0.0, %v1279
      %1281 = vmatmul.bf16.gmra.mxu0 %v1140
      %v1282 = vpop.f32.mrf.mxu0
      %v1283 = vadd.f32 0.0, %v1282
      %v1284 = vpop.f32.mrf.mxu0
      %v1285 = vadd.f32 0.0, %v1284
      %1286 = vmatmul.bf16.gmra.mxu0 %v1143
      %v1287 = vpop.f32.mrf.mxu0
      %v1288 = vadd.f32 0.0, %v1287
      %v1289 = vpop.f32.mrf.mxu0
      %v1290 = vadd.f32 0.0, %v1289
      %1291 = vmatmul.bf16.gmra.mxu0 %v1146
      %v1292 = vpop.f32.mrf.mxu0
      %v1293 = vadd.f32 0.0, %v1292
      %v1294 = vpop.f32.mrf.mxu0
      %v1295 = vadd.f32 0.0, %v1294
      %1296 = vmatmul.bf16.gmra.mxu0 %v1149
      %v1297 = vpop.f32.mrf.mxu0
      %v1298 = vadd.f32 0.0, %v1297
      %v1299 = vpop.f32.mrf.mxu0
      %v1300 = vadd.f32 0.0, %v1299
      %1301 = vmatmul.bf16.gmra.mxu0 %v1152
      %v1302 = vpop.f32.mrf.mxu0
      %v1303 = vadd.f32 0.0, %v1302
      %v1304 = vpop.f32.mrf.mxu0
      %v1305 = vadd.f32 0.0, %v1304
      %1306 = vmatmul.bf16.gmra.mxu0 %v1155
      %v1307 = vpop.f32.mrf.mxu0
      %v1308 = vadd.f32 0.0, %v1307
      %v1309 = vpop.f32.mrf.mxu0
      %v1310 = vadd.f32 0.0, %v1309
      %1311 = vmatmul.bf16.gmra.mxu0 %v1158
      %v1312 = vpop.f32.mrf.mxu0
      %v1313 = vadd.f32 0.0, %v1312
      %v1314 = vpop.f32.mrf.mxu0
      %v1315 = vadd.f32 0.0, %v1314
      %1316 = vmatmul.bf16.gmra.mxu0 %v1161
      %v1317 = vpop.f32.mrf.mxu0
      %v1318 = vadd.f32 0.0, %v1317
      %v1319 = vpop.f32.mrf.mxu0
      %v1320 = vadd.f32 0.0, %v1319
      %1321 = vmatmul.bf16.gmra.mxu0 %v1164
      %v1322 = vpop.f32.mrf.mxu0
      %v1323 = vadd.f32 0.0, %v1322
      %v1324 = vpop.f32.mrf.mxu0
      %v1325 = vadd.f32 0.0, %v1324
      %1326 = vmatmul.bf16.gmra.mxu0 %v1167
      %v1327 = vpop.f32.mrf.mxu0
      %v1328 = vadd.f32 0.0, %v1327
      %v1329 = vpop.f32.mrf.mxu0
      %v1330 = vadd.f32 0.0, %v1329
      %1331 = vmatmul.bf16.gmra.mxu0 %v1170
      %v1332 = vpop.f32.mrf.mxu0
      %v1333 = vadd.f32 0.0, %v1332
      %v1334 = vpop.f32.mrf.mxu0
      %v1335 = vadd.f32 0.0, %v1334
      %1336 = vmatmul.bf16.gmra.mxu0 %v1173
      %v1337 = vpop.f32.mrf.mxu0
      %v1338 = vadd.f32 0.0, %v1337
      %v1339 = vpop.f32.mrf.mxu0
      %v1340 = vadd.f32 0.0, %v1339
      %1341 = vmatmul.bf16.gmra.mxu0 %v1176
      %v1342 = vpop.f32.mrf.mxu0
      %v1343 = vadd.f32 0.0, %v1342
      %v1344 = vpop.f32.mrf.mxu0
      %v1345 = vadd.f32 0.0, %v1344
      %1346 = vmatmul.bf16.gmra.mxu0 %v1179
      %v1347 = vpop.f32.mrf.mxu0
      %v1348 = vadd.f32 0.0, %v1347
      %v1349 = vpop.f32.mrf.mxu0
      %v1350 = vadd.f32 0.0, %v1349
      %1351 = vmatmul.bf16.gmra.mxu0 %v1182
      %v1352 = vpop.f32.mrf.mxu0
      %v1353 = vadd.f32 0.0, %v1352
      %v1354 = vpop.f32.mrf.mxu0
      %v1355 = vadd.f32 0.0, %v1354
      %1356 = vdwg.mxu0
      %v1357 = vxor.u32 %v1198, 2147483648
      %v1358 = vxor.u32 %v1200, 2147483648
      %v1359 = vxor.u32 %v1203, 2147483648
      %v1360 = vxor.u32 %v1205, 2147483648
      %v1361 = vxor.u32 %v1208, 2147483648
      %v1362 = vxor.u32 %v1210, 2147483648
      %v1363 = vxor.u32 %v1213, 2147483648
      %v1364 = vxor.u32 %v1215, 2147483648
      %v1365 = vxor.u32 %v1218, 2147483648
      %v1366 = vxor.u32 %v1220, 2147483648
      %v1367 = vxor.u32 %v1223, 2147483648
      %v1368 = vxor.u32 %v1225, 2147483648
      %v1369 = vxor.u32 %v1228, 2147483648
      %v1370 = vxor.u32 %v1230, 2147483648
      %v1371 = vxor.u32 %v1233, 2147483648
      %v1372 = vxor.u32 %v1235, 2147483648
      %v1373 = vxor.u32 %v1238, 2147483648
      %v1374 = vxor.u32 %v1240, 2147483648
      %v1375 = vxor.u32 %v1243, 2147483648
      %v1376 = vxor.u32 %v1245, 2147483648
      %v1377 = vxor.u32 %v1248, 2147483648
      %v1378 = vxor.u32 %v1250, 2147483648
      %v1379 = vxor.u32 %v1253, 2147483648
      %v1380 = vxor.u32 %v1255, 2147483648
      %v1381 = vxor.u32 %v1258, 2147483648
      %v1382 = vxor.u32 %v1260, 2147483648
      %v1383 = vxor.u32 %v1263, 2147483648
      %v1384 = vxor.u32 %v1265, 2147483648
      %v1385 = vxor.u32 %v1268, 2147483648
      %v1386 = vxor.u32 %v1270, 2147483648
      %v1387 = vxor.u32 %v1273, 2147483648
      %v1388 = vxor.u32 %v1275, 2147483648
      %v1389 = vxor.u32 %v1278, 2147483648
      %v1390 = vxor.u32 %v1280, 2147483648
      %v1391 = vxor.u32 %v1283, 2147483648
      %v1392 = vxor.u32 %v1285, 2147483648
      %v1393 = vxor.u32 %v1288, 2147483648
      %v1394 = vxor.u32 %v1290, 2147483648
      %v1395 = vxor.u32 %v1293, 2147483648
      %v1396 = vxor.u32 %v1295, 2147483648
      %v1397 = vxor.u32 %v1298, 2147483648
      %v1398 = vxor.u32 %v1300, 2147483648
      %v1399 = vxor.u32 %v1303, 2147483648
      %v1400 = vxor.u32 %v1305, 2147483648
      %v1401 = vxor.u32 %v1308, 2147483648
      %v1402 = vxor.u32 %v1310, 2147483648
      %v1403 = vxor.u32 %v1313, 2147483648
      %v1404 = vxor.u32 %v1315, 2147483648
      %v1405 = vxor.u32 %v1318, 2147483648
      %v1406 = vxor.u32 %v1320, 2147483648
      %v1407 = vxor.u32 %v1323, 2147483648
      %v1408 = vxor.u32 %v1325, 2147483648
      %v1409 = vxor.u32 %v1328, 2147483648
      %v1410 = vxor.u32 %v1330, 2147483648
      %v1411 = vxor.u32 %v1333, 2147483648
      %v1412 = vxor.u32 %v1335, 2147483648
      %v1413 = vxor.u32 %v1338, 2147483648
      %v1414 = vxor.u32 %v1340, 2147483648
      %v1415 = vxor.u32 %v1343, 2147483648
      %v1416 = vxor.u32 %v1345, 2147483648
      %v1417 = vxor.u32 %v1348, 2147483648
      %v1418 = vxor.u32 %v1350, 2147483648
      %v1419 = vxor.u32 %v1353, 2147483648
      %v1420 = vxor.u32 %v1355, 2147483648
      %v1421 = vmul.f32 %v1357, 1.442695
      %v1422 = vpow.pop %v1421
      %v1423 = vmul.f32 %v1358, 1.442695
      %v1424 = vpow.pop %v1423
      %v1425 = vmul.f32 %v1359, 1.442695
      %v1426 = vpow.pop %v1425
      %v1427 = vmul.f32 %v1360, 1.442695
      %v1428 = vpow.pop %v1427
      %v1429 = vmul.f32 %v1361, 1.442695
      %v1430 = vpow.pop %v1429
      %v1431 = vmul.f32 %v1362, 1.442695
      %v1432 = vpow.pop %v1431
      %v1433 = vmul.f32 %v1363, 1.442695
      %v1434 = vpow.pop %v1433
      %v1435 = vmul.f32 %v1364, 1.442695
      %v1436 = vpow.pop %v1435
      %v1437 = vmul.f32 %v1365, 1.442695
      %v1438 = vpow.pop %v1437
      %v1439 = vmul.f32 %v1366, 1.442695
      %v1440 = vpow.pop %v1439
      %v1441 = vmul.f32 %v1367, 1.442695
      %v1442 = vpow.pop %v1441
      %v1443 = vmul.f32 %v1368, 1.442695
      %v1444 = vpow.pop %v1443
      %v1445 = vmul.f32 %v1369, 1.442695
      %v1446 = vpow.pop %v1445
      %v1447 = vmul.f32 %v1370, 1.442695
      %v1448 = vpow.pop %v1447
      %v1449 = vmul.f32 %v1371, 1.442695
      %v1450 = vpow.pop %v1449
      %v1451 = vmul.f32 %v1372, 1.442695
      %v1452 = vpow.pop %v1451
      %v1453 = vmul.f32 %v1373, 1.442695
      %v1454 = vpow.pop %v1453
      %v1455 = vmul.f32 %v1374, 1.442695
      %v1456 = vpow.pop %v1455
      %v1457 = vmul.f32 %v1375, 1.442695
      %v1458 = vpow.pop %v1457
      %v1459 = vmul.f32 %v1376, 1.442695
      %v1460 = vpow.pop %v1459
      %v1461 = vmul.f32 %v1377, 1.442695
      %v1462 = vpow.pop %v1461
      %v1463 = vmul.f32 %v1378, 1.442695
      %v1464 = vpow.pop %v1463
      %v1465 = vmul.f32 %v1379, 1.442695
      %v1466 = vpow.pop %v1465
      %v1467 = vmul.f32 %v1380, 1.442695
      %v1468 = vpow.pop %v1467
      %v1469 = vmul.f32 %v1381, 1.442695
      %v1470 = vpow.pop %v1469
      %v1471 = vmul.f32 %v1382, 1.442695
      %v1472 = vpow.pop %v1471
      %v1473 = vmul.f32 %v1383, 1.442695
      %v1474 = vpow.pop %v1473
      %v1475 = vmul.f32 %v1384, 1.442695
      %v1476 = vpow.pop %v1475
      %v1477 = vmul.f32 %v1385, 1.442695
      %v1478 = vpow.pop %v1477
      %v1479 = vmul.f32 %v1386, 1.442695
      %v1480 = vpow.pop %v1479
      %v1481 = vmul.f32 %v1387, 1.442695
      %v1482 = vpow.pop %v1481
      %v1483 = vmul.f32 %v1388, 1.442695
      %v1484 = vpow.pop %v1483
      %v1485 = vmul.f32 %v1389, 1.442695
      %v1486 = vpow.pop %v1485
      %v1487 = vmul.f32 %v1390, 1.442695
      %v1488 = vpow.pop %v1487
      %v1489 = vmul.f32 %v1391, 1.442695
      %v1490 = vpow.pop %v1489
      %v1491 = vmul.f32 %v1392, 1.442695
      %v1492 = vpow.pop %v1491
      %v1493 = vmul.f32 %v1393, 1.442695
      %v1494 = vpow.pop %v1493
      %v1495 = vmul.f32 %v1394, 1.442695
      %v1496 = vpow.pop %v1495
      %v1497 = vmul.f32 %v1395, 1.442695
      %v1498 = vpow.pop %v1497
      %v1499 = vmul.f32 %v1396, 1.442695
      %v1500 = vpow.pop %v1499
      %v1501 = vmul.f32 %v1397, 1.442695
      %v1502 = vpow.pop %v1501
      %v1503 = vmul.f32 %v1398, 1.442695
      %v1504 = vpow.pop %v1503
      %v1505 = vmul.f32 %v1399, 1.442695
      %v1506 = vpow.pop %v1505
      %v1507 = vmul.f32 %v1400, 1.442695
      %v1508 = vpow.pop %v1507
      %v1509 = vmul.f32 %v1401, 1.442695
      %v1510 = vpow.pop %v1509
      %v1511 = vmul.f32 %v1402, 1.442695
      %v1512 = vpow.pop %v1511
      %v1513 = vmul.f32 %v1403, 1.442695
      %v1514 = vpow.pop %v1513
      %v1515 = vmul.f32 %v1404, 1.442695
      %v1516 = vpow.pop %v1515
      %v1517 = vmul.f32 %v1405, 1.442695
      %v1518 = vpow.pop %v1517
      %v1519 = vmul.f32 %v1406, 1.442695
      %v1520 = vpow.pop %v1519
      %v1521 = vmul.f32 %v1407, 1.442695
      %v1522 = vpow.pop %v1521
      %v1523 = vmul.f32 %v1408, 1.442695
      %v1524 = vpow.pop %v1523
      %v1525 = vmul.f32 %v1409, 1.442695
      %v1526 = vpow.pop %v1525
      %v1527 = vmul.f32 %v1410, 1.442695
      %v1528 = vpow.pop %v1527
      %v1529 = vmul.f32 %v1411, 1.442695
      %v1530 = vpow.pop %v1529
      %v1531 = vmul.f32 %v1412, 1.442695
      %v1532 = vpow.pop %v1531
      %v1533 = vmul.f32 %v1413, 1.442695
      %v1534 = vpow.pop %v1533
      %v1535 = vmul.f32 %v1414, 1.442695
      %v1536 = vpow.pop %v1535
      %v1537 = vmul.f32 %v1415, 1.442695
      %v1538 = vpow.pop %v1537
      %v1539 = vmul.f32 %v1416, 1.442695
      %v1540 = vpow.pop %v1539
      %v1541 = vmul.f32 %v1417, 1.442695
      %v1542 = vpow.pop %v1541
      %v1543 = vmul.f32 %v1418, 1.442695
      %v1544 = vpow.pop %v1543
      %v1545 = vmul.f32 %v1419, 1.442695
      %v1546 = vpow.pop %v1545
      %v1547 = vmul.f32 %v1420, 1.442695
      %v1548 = vpow.pop %v1547
      %v1549 = vadd.f32 %v1422, 1.0
      %v1550 = vadd.f32 %v1424, 1.0
      %v1551 = vadd.f32 %v1426, 1.0
      %v1552 = vadd.f32 %v1428, 1.0
      %v1553 = vadd.f32 %v1430, 1.0
      %v1554 = vadd.f32 %v1432, 1.0
      %v1555 = vadd.f32 %v1434, 1.0
      %v1556 = vadd.f32 %v1436, 1.0
      %v1557 = vadd.f32 %v1438, 1.0
      %v1558 = vadd.f32 %v1440, 1.0
      %v1559 = vadd.f32 %v1442, 1.0
      %v1560 = vadd.f32 %v1444, 1.0
      %v1561 = vadd.f32 %v1446, 1.0
      %v1562 = vadd.f32 %v1448, 1.0
      %v1563 = vadd.f32 %v1450, 1.0
      %v1564 = vadd.f32 %v1452, 1.0
      %v1565 = vadd.f32 %v1454, 1.0
      %v1566 = vadd.f32 %v1456, 1.0
      %v1567 = vadd.f32 %v1458, 1.0
      %v1568 = vadd.f32 %v1460, 1.0
      %v1569 = vadd.f32 %v1462, 1.0
      %v1570 = vadd.f32 %v1464, 1.0
      %v1571 = vadd.f32 %v1466, 1.0
      %v1572 = vadd.f32 %v1468, 1.0
      %v1573 = vadd.f32 %v1470, 1.0
      %v1574 = vadd.f32 %v1472, 1.0
      %v1575 = vadd.f32 %v1474, 1.0
      %v1576 = vadd.f32 %v1476, 1.0
      %v1577 = vadd.f32 %v1478, 1.0
      %v1578 = vadd.f32 %v1480, 1.0
      %v1579 = vadd.f32 %v1482, 1.0
      %v1580 = vadd.f32 %v1484, 1.0
      %v1581 = vadd.f32 %v1486, 1.0
      %v1582 = vadd.f32 %v1488, 1.0
      %v1583 = vadd.f32 %v1490, 1.0
      %v1584 = vadd.f32 %v1492, 1.0
      %v1585 = vadd.f32 %v1494, 1.0
      %v1586 = vadd.f32 %v1496, 1.0
      %v1587 = vadd.f32 %v1498, 1.0
      %v1588 = vadd.f32 %v1500, 1.0
      %v1589 = vadd.f32 %v1502, 1.0
      %v1590 = vadd.f32 %v1504, 1.0
      %v1591 = vadd.f32 %v1506, 1.0
      %v1592 = vadd.f32 %v1508, 1.0
      %v1593 = vadd.f32 %v1510, 1.0
      %v1594 = vadd.f32 %v1512, 1.0
      %v1595 = vadd.f32 %v1514, 1.0
      %v1596 = vadd.f32 %v1516, 1.0
      %v1597 = vadd.f32 %v1518, 1.0
      %v1598 = vadd.f32 %v1520, 1.0
      %v1599 = vadd.f32 %v1522, 1.0
      %v1600 = vadd.f32 %v1524, 1.0
      %v1601 = vadd.f32 %v1526, 1.0
      %v1602 = vadd.f32 %v1528, 1.0
      %v1603 = vadd.f32 %v1530, 1.0
      %v1604 = vadd.f32 %v1532, 1.0
      %v1605 = vadd.f32 %v1534, 1.0
      %v1606 = vadd.f32 %v1536, 1.0
      %v1607 = vadd.f32 %v1538, 1.0
      %v1608 = vadd.f32 %v1540, 1.0
      %v1609 = vadd.f32 %v1542, 1.0
      %v1610 = vadd.f32 %v1544, 1.0
      %v1611 = vadd.f32 %v1546, 1.0
      %v1612 = vadd.f32 %v1548, 1.0
      %v1613 = vrcp.pop %v1549
      %v1614 = vmul.f32 %v1549, %v1613
      %v1615 = vsub.f32 1.0, %v1614
      %v1616 = vmul.f32 %v1613, %v1615
      %v1617 = vadd.f32 %v1613, %v1616
      %vm1618 = vweird.f32 %v1549
      %vm1619 = vweird.f32 %v1613
      %vm1620 = vmor %vm1618, %vm1619
      %v1621 = vsel %vm1620, %v1613, %v1617
      %v1622 = vand.u32 2147483647, %v1549
      %vm1623 = vcmp.eq.f32.partialorder %v1622, 8.507059e+37
      %v1624 = vand.u32 %v1549, 2147483648
      %v1625 = vor.u32 1.1754944e-38, %v1624
      %v1626 = vsel %vm1623, %v1625, %v1621
      %v1627 = vmul.f32 1.0, %v1626
      %v1628 = vrcp.pop %v1550
      %v1629 = vmul.f32 %v1550, %v1628
      %v1630 = vsub.f32 1.0, %v1629
      %v1631 = vmul.f32 %v1628, %v1630
      %v1632 = vadd.f32 %v1628, %v1631
      %vm1633 = vweird.f32 %v1550
      %vm1634 = vweird.f32 %v1628
      %vm1635 = vmor %vm1633, %vm1634
      %v1636 = vsel %vm1635, %v1628, %v1632
      %v1637 = vand.u32 2147483647, %v1550
      %vm1638 = vcmp.eq.f32.partialorder %v1637, 8.507059e+37
      %v1639 = vand.u32 %v1550, 2147483648
      %v1640 = vor.u32 1.1754944e-38, %v1639
      %v1641 = vsel %vm1638, %v1640, %v1636
      %v1642 = vmul.f32 1.0, %v1641
      %v1643 = vrcp.pop %v1551
      %v1644 = vmul.f32 %v1551, %v1643
      %v1645 = vsub.f32 1.0, %v1644
      %v1646 = vmul.f32 %v1643, %v1645
      %v1647 = vadd.f32 %v1643, %v1646
      %vm1648 = vweird.f32 %v1551
      %vm1649 = vweird.f32 %v1643
      %vm1650 = vmor %vm1648, %vm1649
      %v1651 = vsel %vm1650, %v1643, %v1647
      %v1652 = vand.u32 2147483647, %v1551
      %vm1653 = vcmp.eq.f32.partialorder %v1652, 8.507059e+37
      %v1654 = vand.u32 %v1551, 2147483648
      %v1655 = vor.u32 1.1754944e-38, %v1654
      %v1656 = vsel %vm1653, %v1655, %v1651
      %v1657 = vmul.f32 1.0, %v1656
      %v1658 = vrcp.pop %v1552
      %v1659 = vmul.f32 %v1552, %v1658
      %v1660 = vsub.f32 1.0, %v1659
      %v1661 = vmul.f32 %v1658, %v1660
      %v1662 = vadd.f32 %v1658, %v1661
      %vm1663 = vweird.f32 %v1552
      %vm1664 = vweird.f32 %v1658
      %vm1665 = vmor %vm1663, %vm1664
      %v1666 = vsel %vm1665, %v1658, %v1662
      %v1667 = vand.u32 2147483647, %v1552
      %vm1668 = vcmp.eq.f32.partialorder %v1667, 8.507059e+37
      %v1669 = vand.u32 %v1552, 2147483648
      %v1670 = vor.u32 1.1754944e-38, %v1669
      %v1671 = vsel %vm1668, %v1670, %v1666
      %v1672 = vmul.f32 1.0, %v1671
      %v1673 = vrcp.pop %v1553
      %v1674 = vmul.f32 %v1553, %v1673
      %v1675 = vsub.f32 1.0, %v1674
      %v1676 = vmul.f32 %v1673, %v1675
      %v1677 = vadd.f32 %v1673, %v1676
      %vm1678 = vweird.f32 %v1553
      %vm1679 = vweird.f32 %v1673
      %vm1680 = vmor %vm1678, %vm1679
      %v1681 = vsel %vm1680, %v1673, %v1677
      %v1682 = vand.u32 2147483647, %v1553
      %vm1683 = vcmp.eq.f32.partialorder %v1682, 8.507059e+37
      %v1684 = vand.u32 %v1553, 2147483648
      %v1685 = vor.u32 1.1754944e-38, %v1684
      %v1686 = vsel %vm1683, %v1685, %v1681
      %v1687 = vmul.f32 1.0, %v1686
      %v1688 = vrcp.pop %v1554
      %v1689 = vmul.f32 %v1554, %v1688
      %v1690 = vsub.f32 1.0, %v1689
      %v1691 = vmul.f32 %v1688, %v1690
      %v1692 = vadd.f32 %v1688, %v1691
      %vm1693 = vweird.f32 %v1554
      %vm1694 = vweird.f32 %v1688
      %vm1695 = vmor %vm1693, %vm1694
      %v1696 = vsel %vm1695, %v1688, %v1692
      %v1697 = vand.u32 2147483647, %v1554
      %vm1698 = vcmp.eq.f32.partialorder %v1697, 8.507059e+37
      %v1699 = vand.u32 %v1554, 2147483648
      %v1700 = vor.u32 1.1754944e-38, %v1699
      %v1701 = vsel %vm1698, %v1700, %v1696
      %v1702 = vmul.f32 1.0, %v1701
      %v1703 = vrcp.pop %v1555
      %v1704 = vmul.f32 %v1555, %v1703
      %v1705 = vsub.f32 1.0, %v1704
      %v1706 = vmul.f32 %v1703, %v1705
      %v1707 = vadd.f32 %v1703, %v1706
      %vm1708 = vweird.f32 %v1555
      %vm1709 = vweird.f32 %v1703
      %vm1710 = vmor %vm1708, %vm1709
      %v1711 = vsel %vm1710, %v1703, %v1707
      %v1712 = vand.u32 2147483647, %v1555
      %vm1713 = vcmp.eq.f32.partialorder %v1712, 8.507059e+37
      %v1714 = vand.u32 %v1555, 2147483648
      %v1715 = vor.u32 1.1754944e-38, %v1714
      %v1716 = vsel %vm1713, %v1715, %v1711
      %v1717 = vmul.f32 1.0, %v1716
      %v1718 = vrcp.pop %v1556
      %v1719 = vmul.f32 %v1556, %v1718
      %v1720 = vsub.f32 1.0, %v1719
      %v1721 = vmul.f32 %v1718, %v1720
      %v1722 = vadd.f32 %v1718, %v1721
      %vm1723 = vweird.f32 %v1556
      %vm1724 = vweird.f32 %v1718
      %vm1725 = vmor %vm1723, %vm1724
      %v1726 = vsel %vm1725, %v1718, %v1722
      %v1727 = vand.u32 2147483647, %v1556
      %vm1728 = vcmp.eq.f32.partialorder %v1727, 8.507059e+37
      %v1729 = vand.u32 %v1556, 2147483648
      %v1730 = vor.u32 1.1754944e-38, %v1729
      %v1731 = vsel %vm1728, %v1730, %v1726
      %v1732 = vmul.f32 1.0, %v1731
      %v1733 = vrcp.pop %v1557
      %v1734 = vmul.f32 %v1557, %v1733
      %v1735 = vsub.f32 1.0, %v1734
      %v1736 = vmul.f32 %v1733, %v1735
      %v1737 = vadd.f32 %v1733, %v1736
      %vm1738 = vweird.f32 %v1557
      %vm1739 = vweird.f32 %v1733
      %vm1740 = vmor %vm1738, %vm1739
      %v1741 = vsel %vm1740, %v1733, %v1737
      %v1742 = vand.u32 2147483647, %v1557
      %vm1743 = vcmp.eq.f32.partialorder %v1742, 8.507059e+37
      %v1744 = vand.u32 %v1557, 2147483648
      %v1745 = vor.u32 1.1754944e-38, %v1744
      %v1746 = vsel %vm1743, %v1745, %v1741
      %v1747 = vmul.f32 1.0, %v1746
      %v1748 = vrcp.pop %v1558
      %v1749 = vmul.f32 %v1558, %v1748
      %v1750 = vsub.f32 1.0, %v1749
      %v1751 = vmul.f32 %v1748, %v1750
      %v1752 = vadd.f32 %v1748, %v1751
      %vm1753 = vweird.f32 %v1558
      %vm1754 = vweird.f32 %v1748
      %vm1755 = vmor %vm1753, %vm1754
      %v1756 = vsel %vm1755, %v1748, %v1752
      %v1757 = vand.u32 2147483647, %v1558
      %vm1758 = vcmp.eq.f32.partialorder %v1757, 8.507059e+37
      %v1759 = vand.u32 %v1558, 2147483648
      %v1760 = vor.u32 1.1754944e-38, %v1759
      %v1761 = vsel %vm1758, %v1760, %v1756
      %v1762 = vmul.f32 1.0, %v1761
      %v1763 = vrcp.pop %v1559
      %v1764 = vmul.f32 %v1559, %v1763
      %v1765 = vsub.f32 1.0, %v1764
      %v1766 = vmul.f32 %v1763, %v1765
      %v1767 = vadd.f32 %v1763, %v1766
      %vm1768 = vweird.f32 %v1559
      %vm1769 = vweird.f32 %v1763
      %vm1770 = vmor %vm1768, %vm1769
      %v1771 = vsel %vm1770, %v1763, %v1767
      %v1772 = vand.u32 2147483647, %v1559
      %vm1773 = vcmp.eq.f32.partialorder %v1772, 8.507059e+37
      %v1774 = vand.u32 %v1559, 2147483648
      %v1775 = vor.u32 1.1754944e-38, %v1774
      %v1776 = vsel %vm1773, %v1775, %v1771
      %v1777 = vmul.f32 1.0, %v1776
      %v1778 = vrcp.pop %v1560
      %v1779 = vmul.f32 %v1560, %v1778
      %v1780 = vsub.f32 1.0, %v1779
      %v1781 = vmul.f32 %v1778, %v1780
      %v1782 = vadd.f32 %v1778, %v1781
      %vm1783 = vweird.f32 %v1560
      %vm1784 = vweird.f32 %v1778
      %vm1785 = vmor %vm1783, %vm1784
      %v1786 = vsel %vm1785, %v1778, %v1782
      %v1787 = vand.u32 2147483647, %v1560
      %vm1788 = vcmp.eq.f32.partialorder %v1787, 8.507059e+37
      %v1789 = vand.u32 %v1560, 2147483648
      %v1790 = vor.u32 1.1754944e-38, %v1789
      %v1791 = vsel %vm1788, %v1790, %v1786
      %v1792 = vmul.f32 1.0, %v1791
      %v1793 = vrcp.pop %v1561
      %v1794 = vmul.f32 %v1561, %v1793
      %v1795 = vsub.f32 1.0, %v1794
      %v1796 = vmul.f32 %v1793, %v1795
      %v1797 = vadd.f32 %v1793, %v1796
      %vm1798 = vweird.f32 %v1561
      %vm1799 = vweird.f32 %v1793
      %vm1800 = vmor %vm1798, %vm1799
      %v1801 = vsel %vm1800, %v1793, %v1797
      %v1802 = vand.u32 2147483647, %v1561
      %vm1803 = vcmp.eq.f32.partialorder %v1802, 8.507059e+37
      %v1804 = vand.u32 %v1561, 2147483648
      %v1805 = vor.u32 1.1754944e-38, %v1804
      %v1806 = vsel %vm1803, %v1805, %v1801
      %v1807 = vmul.f32 1.0, %v1806
      %v1808 = vrcp.pop %v1562
      %v1809 = vmul.f32 %v1562, %v1808
      %v1810 = vsub.f32 1.0, %v1809
      %v1811 = vmul.f32 %v1808, %v1810
      %v1812 = vadd.f32 %v1808, %v1811
      %vm1813 = vweird.f32 %v1562
      %vm1814 = vweird.f32 %v1808
      %vm1815 = vmor %vm1813, %vm1814
      %v1816 = vsel %vm1815, %v1808, %v1812
      %v1817 = vand.u32 2147483647, %v1562
      %vm1818 = vcmp.eq.f32.partialorder %v1817, 8.507059e+37
      %v1819 = vand.u32 %v1562, 2147483648
      %v1820 = vor.u32 1.1754944e-38, %v1819
      %v1821 = vsel %vm1818, %v1820, %v1816
      %v1822 = vmul.f32 1.0, %v1821
      %v1823 = vrcp.pop %v1563
      %v1824 = vmul.f32 %v1563, %v1823
      %v1825 = vsub.f32 1.0, %v1824
      %v1826 = vmul.f32 %v1823, %v1825
      %v1827 = vadd.f32 %v1823, %v1826
      %vm1828 = vweird.f32 %v1563
      %vm1829 = vweird.f32 %v1823
      %vm1830 = vmor %vm1828, %vm1829
      %v1831 = vsel %vm1830, %v1823, %v1827
      %v1832 = vand.u32 2147483647, %v1563
      %vm1833 = vcmp.eq.f32.partialorder %v1832, 8.507059e+37
      %v1834 = vand.u32 %v1563, 2147483648
      %v1835 = vor.u32 1.1754944e-38, %v1834
      %v1836 = vsel %vm1833, %v1835, %v1831
      %v1837 = vmul.f32 1.0, %v1836
      %v1838 = vrcp.pop %v1564
      %v1839 = vmul.f32 %v1564, %v1838
      %v1840 = vsub.f32 1.0, %v1839
      %v1841 = vmul.f32 %v1838, %v1840
      %v1842 = vadd.f32 %v1838, %v1841
      %vm1843 = vweird.f32 %v1564
      %vm1844 = vweird.f32 %v1838
      %vm1845 = vmor %vm1843, %vm1844
      %v1846 = vsel %vm1845, %v1838, %v1842
      %v1847 = vand.u32 2147483647, %v1564
      %vm1848 = vcmp.eq.f32.partialorder %v1847, 8.507059e+37
      %v1849 = vand.u32 %v1564, 2147483648
      %v1850 = vor.u32 1.1754944e-38, %v1849
      %v1851 = vsel %vm1848, %v1850, %v1846
      %v1852 = vmul.f32 1.0, %v1851
      %v1853 = vrcp.pop %v1565
      %v1854 = vmul.f32 %v1565, %v1853
      %v1855 = vsub.f32 1.0, %v1854
      %v1856 = vmul.f32 %v1853, %v1855
      %v1857 = vadd.f32 %v1853, %v1856
      %vm1858 = vweird.f32 %v1565
      %vm1859 = vweird.f32 %v1853
      %vm1860 = vmor %vm1858, %vm1859
      %v1861 = vsel %vm1860, %v1853, %v1857
      %v1862 = vand.u32 2147483647, %v1565
      %vm1863 = vcmp.eq.f32.partialorder %v1862, 8.507059e+37
      %v1864 = vand.u32 %v1565, 2147483648
      %v1865 = vor.u32 1.1754944e-38, %v1864
      %v1866 = vsel %vm1863, %v1865, %v1861
      %v1867 = vmul.f32 1.0, %v1866
      %v1868 = vrcp.pop %v1566
      %v1869 = vmul.f32 %v1566, %v1868
      %v1870 = vsub.f32 1.0, %v1869
      %v1871 = vmul.f32 %v1868, %v1870
      %v1872 = vadd.f32 %v1868, %v1871
      %vm1873 = vweird.f32 %v1566
      %vm1874 = vweird.f32 %v1868
      %vm1875 = vmor %vm1873, %vm1874
      %v1876 = vsel %vm1875, %v1868, %v1872
      %v1877 = vand.u32 2147483647, %v1566
      %vm1878 = vcmp.eq.f32.partialorder %v1877, 8.507059e+37
      %v1879 = vand.u32 %v1566, 2147483648
      %v1880 = vor.u32 1.1754944e-38, %v1879
      %v1881 = vsel %vm1878, %v1880, %v1876
      %v1882 = vmul.f32 1.0, %v1881
      %v1883 = vrcp.pop %v1567
      %v1884 = vmul.f32 %v1567, %v1883
      %v1885 = vsub.f32 1.0, %v1884
      %v1886 = vmul.f32 %v1883, %v1885
      %v1887 = vadd.f32 %v1883, %v1886
      %vm1888 = vweird.f32 %v1567
      %vm1889 = vweird.f32 %v1883
      %vm1890 = vmor %vm1888, %vm1889
      %v1891 = vsel %vm1890, %v1883, %v1887
      %v1892 = vand.u32 2147483647, %v1567
      %vm1893 = vcmp.eq.f32.partialorder %v1892, 8.507059e+37
      %v1894 = vand.u32 %v1567, 2147483648
      %v1895 = vor.u32 1.1754944e-38, %v1894
      %v1896 = vsel %vm1893, %v1895, %v1891
      %v1897 = vmul.f32 1.0, %v1896
      %v1898 = vrcp.pop %v1568
      %v1899 = vmul.f32 %v1568, %v1898
      %v1900 = vsub.f32 1.0, %v1899
      %v1901 = vmul.f32 %v1898, %v1900
      %v1902 = vadd.f32 %v1898, %v1901
      %vm1903 = vweird.f32 %v1568
      %vm1904 = vweird.f32 %v1898
      %vm1905 = vmor %vm1903, %vm1904
      %v1906 = vsel %vm1905, %v1898, %v1902
      %v1907 = vand.u32 2147483647, %v1568
      %vm1908 = vcmp.eq.f32.partialorder %v1907, 8.507059e+37
      %v1909 = vand.u32 %v1568, 2147483648
      %v1910 = vor.u32 1.1754944e-38, %v1909
      %v1911 = vsel %vm1908, %v1910, %v1906
      %v1912 = vmul.f32 1.0, %v1911
      %v1913 = vrcp.pop %v1569
      %v1914 = vmul.f32 %v1569, %v1913
      %v1915 = vsub.f32 1.0, %v1914
      %v1916 = vmul.f32 %v1913, %v1915
      %v1917 = vadd.f32 %v1913, %v1916
      %vm1918 = vweird.f32 %v1569
      %vm1919 = vweird.f32 %v1913
      %vm1920 = vmor %vm1918, %vm1919
      %v1921 = vsel %vm1920, %v1913, %v1917
      %v1922 = vand.u32 2147483647, %v1569
      %vm1923 = vcmp.eq.f32.partialorder %v1922, 8.507059e+37
      %v1924 = vand.u32 %v1569, 2147483648
      %v1925 = vor.u32 1.1754944e-38, %v1924
      %v1926 = vsel %vm1923, %v1925, %v1921
      %v1927 = vmul.f32 1.0, %v1926
      %v1928 = vrcp.pop %v1570
      %v1929 = vmul.f32 %v1570, %v1928
      %v1930 = vsub.f32 1.0, %v1929
      %v1931 = vmul.f32 %v1928, %v1930
      %v1932 = vadd.f32 %v1928, %v1931
      %vm1933 = vweird.f32 %v1570
      %vm1934 = vweird.f32 %v1928
      %vm1935 = vmor %vm1933, %vm1934
      %v1936 = vsel %vm1935, %v1928, %v1932
      %v1937 = vand.u32 2147483647, %v1570
      %vm1938 = vcmp.eq.f32.partialorder %v1937, 8.507059e+37
      %v1939 = vand.u32 %v1570, 2147483648
      %v1940 = vor.u32 1.1754944e-38, %v1939
      %v1941 = vsel %vm1938, %v1940, %v1936
      %v1942 = vmul.f32 1.0, %v1941
      %v1943 = vrcp.pop %v1571
      %v1944 = vmul.f32 %v1571, %v1943
      %v1945 = vsub.f32 1.0, %v1944
      %v1946 = vmul.f32 %v1943, %v1945
      %v1947 = vadd.f32 %v1943, %v1946
      %vm1948 = vweird.f32 %v1571
      %vm1949 = vweird.f32 %v1943
      %vm1950 = vmor %vm1948, %vm1949
      %v1951 = vsel %vm1950, %v1943, %v1947
      %v1952 = vand.u32 2147483647, %v1571
      %vm1953 = vcmp.eq.f32.partialorder %v1952, 8.507059e+37
      %v1954 = vand.u32 %v1571, 2147483648
      %v1955 = vor.u32 1.1754944e-38, %v1954
      %v1956 = vsel %vm1953, %v1955, %v1951
      %v1957 = vmul.f32 1.0, %v1956
      %v1958 = vrcp.pop %v1572
      %v1959 = vmul.f32 %v1572, %v1958
      %v1960 = vsub.f32 1.0, %v1959
      %v1961 = vmul.f32 %v1958, %v1960
      %v1962 = vadd.f32 %v1958, %v1961
      %vm1963 = vweird.f32 %v1572
      %vm1964 = vweird.f32 %v1958
      %vm1965 = vmor %vm1963, %vm1964
      %v1966 = vsel %vm1965, %v1958, %v1962
      %v1967 = vand.u32 2147483647, %v1572
      %vm1968 = vcmp.eq.f32.partialorder %v1967, 8.507059e+37
      %v1969 = vand.u32 %v1572, 2147483648
      %v1970 = vor.u32 1.1754944e-38, %v1969
      %v1971 = vsel %vm1968, %v1970, %v1966
      %v1972 = vmul.f32 1.0, %v1971
      %v1973 = vrcp.pop %v1573
      %v1974 = vmul.f32 %v1573, %v1973
      %v1975 = vsub.f32 1.0, %v1974
      %v1976 = vmul.f32 %v1973, %v1975
      %v1977 = vadd.f32 %v1973, %v1976
      %vm1978 = vweird.f32 %v1573
      %vm1979 = vweird.f32 %v1973
      %vm1980 = vmor %vm1978, %vm1979
      %v1981 = vsel %vm1980, %v1973, %v1977
      %v1982 = vand.u32 2147483647, %v1573
      %vm1983 = vcmp.eq.f32.partialorder %v1982, 8.507059e+37
      %v1984 = vand.u32 %v1573, 2147483648
      %v1985 = vor.u32 1.1754944e-38, %v1984
      %v1986 = vsel %vm1983, %v1985, %v1981
      %v1987 = vmul.f32 1.0, %v1986
      %v1988 = vrcp.pop %v1574
      %v1989 = vmul.f32 %v1574, %v1988
      %v1990 = vsub.f32 1.0, %v1989
      %v1991 = vmul.f32 %v1988, %v1990
      %v1992 = vadd.f32 %v1988, %v1991
      %vm1993 = vweird.f32 %v1574
      %vm1994 = vweird.f32 %v1988
      %vm1995 = vmor %vm1993, %vm1994
      %v1996 = vsel %vm1995, %v1988, %v1992
      %v1997 = vand.u32 2147483647, %v1574
      %vm1998 = vcmp.eq.f32.partialorder %v1997, 8.507059e+37
      %v1999 = vand.u32 %v1574, 2147483648
      %v2000 = vor.u32 1.1754944e-38, %v1999
      %v2001 = vsel %vm1998, %v2000, %v1996
      %v2002 = vmul.f32 1.0, %v2001
      %v2003 = vrcp.pop %v1575
      %v2004 = vmul.f32 %v1575, %v2003
      %v2005 = vsub.f32 1.0, %v2004
      %v2006 = vmul.f32 %v2003, %v2005
      %v2007 = vadd.f32 %v2003, %v2006
      %vm2008 = vweird.f32 %v1575
      %vm2009 = vweird.f32 %v2003
      %vm2010 = vmor %vm2008, %vm2009
      %v2011 = vsel %vm2010, %v2003, %v2007
      %v2012 = vand.u32 2147483647, %v1575
      %vm2013 = vcmp.eq.f32.partialorder %v2012, 8.507059e+37
      %v2014 = vand.u32 %v1575, 2147483648
      %v2015 = vor.u32 1.1754944e-38, %v2014
      %v2016 = vsel %vm2013, %v2015, %v2011
      %v2017 = vmul.f32 1.0, %v2016
      %v2018 = vrcp.pop %v1576
      %v2019 = vmul.f32 %v1576, %v2018
      %v2020 = vsub.f32 1.0, %v2019
      %v2021 = vmul.f32 %v2018, %v2020
      %v2022 = vadd.f32 %v2018, %v2021
      %vm2023 = vweird.f32 %v1576
      %vm2024 = vweird.f32 %v2018
      %vm2025 = vmor %vm2023, %vm2024
      %v2026 = vsel %vm2025, %v2018, %v2022
      %v2027 = vand.u32 2147483647, %v1576
      %vm2028 = vcmp.eq.f32.partialorder %v2027, 8.507059e+37
      %v2029 = vand.u32 %v1576, 2147483648
      %v2030 = vor.u32 1.1754944e-38, %v2029
      %v2031 = vsel %vm2028, %v2030, %v2026
      %v2032 = vmul.f32 1.0, %v2031
      %v2033 = vrcp.pop %v1577
      %v2034 = vmul.f32 %v1577, %v2033
      %v2035 = vsub.f32 1.0, %v2034
      %v2036 = vmul.f32 %v2033, %v2035
      %v2037 = vadd.f32 %v2033, %v2036
      %vm2038 = vweird.f32 %v1577
      %vm2039 = vweird.f32 %v2033
      %vm2040 = vmor %vm2038, %vm2039
      %v2041 = vsel %vm2040, %v2033, %v2037
      %v2042 = vand.u32 2147483647, %v1577
      %vm2043 = vcmp.eq.f32.partialorder %v2042, 8.507059e+37
      %v2044 = vand.u32 %v1577, 2147483648
      %v2045 = vor.u32 1.1754944e-38, %v2044
      %v2046 = vsel %vm2043, %v2045, %v2041
      %v2047 = vmul.f32 1.0, %v2046
      %v2048 = vrcp.pop %v1578
      %v2049 = vmul.f32 %v1578, %v2048
      %v2050 = vsub.f32 1.0, %v2049
      %v2051 = vmul.f32 %v2048, %v2050
      %v2052 = vadd.f32 %v2048, %v2051
      %vm2053 = vweird.f32 %v1578
      %vm2054 = vweird.f32 %v2048
      %vm2055 = vmor %vm2053, %vm2054
      %v2056 = vsel %vm2055, %v2048, %v2052
      %v2057 = vand.u32 2147483647, %v1578
      %vm2058 = vcmp.eq.f32.partialorder %v2057, 8.507059e+37
      %v2059 = vand.u32 %v1578, 2147483648
      %v2060 = vor.u32 1.1754944e-38, %v2059
      %v2061 = vsel %vm2058, %v2060, %v2056
      %v2062 = vmul.f32 1.0, %v2061
      %v2063 = vrcp.pop %v1579
      %v2064 = vmul.f32 %v1579, %v2063
      %v2065 = vsub.f32 1.0, %v2064
      %v2066 = vmul.f32 %v2063, %v2065
      %v2067 = vadd.f32 %v2063, %v2066
      %vm2068 = vweird.f32 %v1579
      %vm2069 = vweird.f32 %v2063
      %vm2070 = vmor %vm2068, %vm2069
      %v2071 = vsel %vm2070, %v2063, %v2067
      %v2072 = vand.u32 2147483647, %v1579
      %vm2073 = vcmp.eq.f32.partialorder %v2072, 8.507059e+37
      %v2074 = vand.u32 %v1579, 2147483648
      %v2075 = vor.u32 1.1754944e-38, %v2074
      %v2076 = vsel %vm2073, %v2075, %v2071
      %v2077 = vmul.f32 1.0, %v2076
      %v2078 = vrcp.pop %v1580
      %v2079 = vmul.f32 %v1580, %v2078
      %v2080 = vsub.f32 1.0, %v2079
      %v2081 = vmul.f32 %v2078, %v2080
      %v2082 = vadd.f32 %v2078, %v2081
      %vm2083 = vweird.f32 %v1580
      %vm2084 = vweird.f32 %v2078
      %vm2085 = vmor %vm2083, %vm2084
      %v2086 = vsel %vm2085, %v2078, %v2082
      %v2087 = vand.u32 2147483647, %v1580
      %vm2088 = vcmp.eq.f32.partialorder %v2087, 8.507059e+37
      %v2089 = vand.u32 %v1580, 2147483648
      %v2090 = vor.u32 1.1754944e-38, %v2089
      %v2091 = vsel %vm2088, %v2090, %v2086
      %v2092 = vmul.f32 1.0, %v2091
      %v2093 = vrcp.pop %v1581
      %v2094 = vmul.f32 %v1581, %v2093
      %v2095 = vsub.f32 1.0, %v2094
      %v2096 = vmul.f32 %v2093, %v2095
      %v2097 = vadd.f32 %v2093, %v2096
      %vm2098 = vweird.f32 %v1581
      %vm2099 = vweird.f32 %v2093
      %vm2100 = vmor %vm2098, %vm2099
      %v2101 = vsel %vm2100, %v2093, %v2097
      %v2102 = vand.u32 2147483647, %v1581
      %vm2103 = vcmp.eq.f32.partialorder %v2102, 8.507059e+37
      %v2104 = vand.u32 %v1581, 2147483648
      %v2105 = vor.u32 1.1754944e-38, %v2104
      %v2106 = vsel %vm2103, %v2105, %v2101
      %v2107 = vmul.f32 1.0, %v2106
      %v2108 = vrcp.pop %v1582
      %v2109 = vmul.f32 %v1582, %v2108
      %v2110 = vsub.f32 1.0, %v2109
      %v2111 = vmul.f32 %v2108, %v2110
      %v2112 = vadd.f32 %v2108, %v2111
      %vm2113 = vweird.f32 %v1582
      %vm2114 = vweird.f32 %v2108
      %vm2115 = vmor %vm2113, %vm2114
      %v2116 = vsel %vm2115, %v2108, %v2112
      %v2117 = vand.u32 2147483647, %v1582
      %vm2118 = vcmp.eq.f32.partialorder %v2117, 8.507059e+37
      %v2119 = vand.u32 %v1582, 2147483648
      %v2120 = vor.u32 1.1754944e-38, %v2119
      %v2121 = vsel %vm2118, %v2120, %v2116
      %v2122 = vmul.f32 1.0, %v2121
      %v2123 = vrcp.pop %v1583
      %v2124 = vmul.f32 %v1583, %v2123
      %v2125 = vsub.f32 1.0, %v2124
      %v2126 = vmul.f32 %v2123, %v2125
      %v2127 = vadd.f32 %v2123, %v2126
      %vm2128 = vweird.f32 %v1583
      %vm2129 = vweird.f32 %v2123
      %vm2130 = vmor %vm2128, %vm2129
      %v2131 = vsel %vm2130, %v2123, %v2127
      %v2132 = vand.u32 2147483647, %v1583
      %vm2133 = vcmp.eq.f32.partialorder %v2132, 8.507059e+37
      %v2134 = vand.u32 %v1583, 2147483648
      %v2135 = vor.u32 1.1754944e-38, %v2134
      %v2136 = vsel %vm2133, %v2135, %v2131
      %v2137 = vmul.f32 1.0, %v2136
      %v2138 = vrcp.pop %v1584
      %v2139 = vmul.f32 %v1584, %v2138
      %v2140 = vsub.f32 1.0, %v2139
      %v2141 = vmul.f32 %v2138, %v2140
      %v2142 = vadd.f32 %v2138, %v2141
      %vm2143 = vweird.f32 %v1584
      %vm2144 = vweird.f32 %v2138
      %vm2145 = vmor %vm2143, %vm2144
      %v2146 = vsel %vm2145, %v2138, %v2142
      %v2147 = vand.u32 2147483647, %v1584
      %vm2148 = vcmp.eq.f32.partialorder %v2147, 8.507059e+37
      %v2149 = vand.u32 %v1584, 2147483648
      %v2150 = vor.u32 1.1754944e-38, %v2149
      %v2151 = vsel %vm2148, %v2150, %v2146
      %v2152 = vmul.f32 1.0, %v2151
      %v2153 = vrcp.pop %v1585
      %v2154 = vmul.f32 %v1585, %v2153
      %v2155 = vsub.f32 1.0, %v2154
      %v2156 = vmul.f32 %v2153, %v2155
      %v2157 = vadd.f32 %v2153, %v2156
      %vm2158 = vweird.f32 %v1585
      %vm2159 = vweird.f32 %v2153
      %vm2160 = vmor %vm2158, %vm2159
      %v2161 = vsel %vm2160, %v2153, %v2157
      %v2162 = vand.u32 2147483647, %v1585
      %vm2163 = vcmp.eq.f32.partialorder %v2162, 8.507059e+37
      %v2164 = vand.u32 %v1585, 2147483648
      %v2165 = vor.u32 1.1754944e-38, %v2164
      %v2166 = vsel %vm2163, %v2165, %v2161
      %v2167 = vmul.f32 1.0, %v2166
      %v2168 = vrcp.pop %v1586
      %v2169 = vmul.f32 %v1586, %v2168
      %v2170 = vsub.f32 1.0, %v2169
      %v2171 = vmul.f32 %v2168, %v2170
      %v2172 = vadd.f32 %v2168, %v2171
      %vm2173 = vweird.f32 %v1586
      %vm2174 = vweird.f32 %v2168
      %vm2175 = vmor %vm2173, %vm2174
      %v2176 = vsel %vm2175, %v2168, %v2172
      %v2177 = vand.u32 2147483647, %v1586
      %vm2178 = vcmp.eq.f32.partialorder %v2177, 8.507059e+37
      %v2179 = vand.u32 %v1586, 2147483648
      %v2180 = vor.u32 1.1754944e-38, %v2179
      %v2181 = vsel %vm2178, %v2180, %v2176
      %v2182 = vmul.f32 1.0, %v2181
      %v2183 = vrcp.pop %v1587
      %v2184 = vmul.f32 %v1587, %v2183
      %v2185 = vsub.f32 1.0, %v2184
      %v2186 = vmul.f32 %v2183, %v2185
      %v2187 = vadd.f32 %v2183, %v2186
      %vm2188 = vweird.f32 %v1587
      %vm2189 = vweird.f32 %v2183
      %vm2190 = vmor %vm2188, %vm2189
      %v2191 = vsel %vm2190, %v2183, %v2187
      %v2192 = vand.u32 2147483647, %v1587
      %vm2193 = vcmp.eq.f32.partialorder %v2192, 8.507059e+37
      %v2194 = vand.u32 %v1587, 2147483648
      %v2195 = vor.u32 1.1754944e-38, %v2194
      %v2196 = vsel %vm2193, %v2195, %v2191
      %v2197 = vmul.f32 1.0, %v2196
      %v2198 = vrcp.pop %v1588
      %v2199 = vmul.f32 %v1588, %v2198
      %v2200 = vsub.f32 1.0, %v2199
      %v2201 = vmul.f32 %v2198, %v2200
      %v2202 = vadd.f32 %v2198, %v2201
      %vm2203 = vweird.f32 %v1588
      %vm2204 = vweird.f32 %v2198
      %vm2205 = vmor %vm2203, %vm2204
      %v2206 = vsel %vm2205, %v2198, %v2202
      %v2207 = vand.u32 2147483647, %v1588
      %vm2208 = vcmp.eq.f32.partialorder %v2207, 8.507059e+37
      %v2209 = vand.u32 %v1588, 2147483648
      %v2210 = vor.u32 1.1754944e-38, %v2209
      %v2211 = vsel %vm2208, %v2210, %v2206
      %v2212 = vmul.f32 1.0, %v2211
      %v2213 = vrcp.pop %v1589
      %v2214 = vmul.f32 %v1589, %v2213
      %v2215 = vsub.f32 1.0, %v2214
      %v2216 = vmul.f32 %v2213, %v2215
      %v2217 = vadd.f32 %v2213, %v2216
      %vm2218 = vweird.f32 %v1589
      %vm2219 = vweird.f32 %v2213
      %vm2220 = vmor %vm2218, %vm2219
      %v2221 = vsel %vm2220, %v2213, %v2217
      %v2222 = vand.u32 2147483647, %v1589
      %vm2223 = vcmp.eq.f32.partialorder %v2222, 8.507059e+37
      %v2224 = vand.u32 %v1589, 2147483648
      %v2225 = vor.u32 1.1754944e-38, %v2224
      %v2226 = vsel %vm2223, %v2225, %v2221
      %v2227 = vmul.f32 1.0, %v2226
      %v2228 = vrcp.pop %v1590
      %v2229 = vmul.f32 %v1590, %v2228
      %v2230 = vsub.f32 1.0, %v2229
      %v2231 = vmul.f32 %v2228, %v2230
      %v2232 = vadd.f32 %v2228, %v2231
      %vm2233 = vweird.f32 %v1590
      %vm2234 = vweird.f32 %v2228
      %vm2235 = vmor %vm2233, %vm2234
      %v2236 = vsel %vm2235, %v2228, %v2232
      %v2237 = vand.u32 2147483647, %v1590
      %vm2238 = vcmp.eq.f32.partialorder %v2237, 8.507059e+37
      %v2239 = vand.u32 %v1590, 2147483648
      %v2240 = vor.u32 1.1754944e-38, %v2239
      %v2241 = vsel %vm2238, %v2240, %v2236
      %v2242 = vmul.f32 1.0, %v2241
      %v2243 = vrcp.pop %v1591
      %v2244 = vmul.f32 %v1591, %v2243
      %v2245 = vsub.f32 1.0, %v2244
      %v2246 = vmul.f32 %v2243, %v2245
      %v2247 = vadd.f32 %v2243, %v2246
      %vm2248 = vweird.f32 %v1591
      %vm2249 = vweird.f32 %v2243
      %vm2250 = vmor %vm2248, %vm2249
      %v2251 = vsel %vm2250, %v2243, %v2247
      %v2252 = vand.u32 2147483647, %v1591
      %vm2253 = vcmp.eq.f32.partialorder %v2252, 8.507059e+37
      %v2254 = vand.u32 %v1591, 2147483648
      %v2255 = vor.u32 1.1754944e-38, %v2254
      %v2256 = vsel %vm2253, %v2255, %v2251
      %v2257 = vmul.f32 1.0, %v2256
      %v2258 = vrcp.pop %v1592
      %v2259 = vmul.f32 %v1592, %v2258
      %v2260 = vsub.f32 1.0, %v2259
      %v2261 = vmul.f32 %v2258, %v2260
      %v2262 = vadd.f32 %v2258, %v2261
      %vm2263 = vweird.f32 %v1592
      %vm2264 = vweird.f32 %v2258
      %vm2265 = vmor %vm2263, %vm2264
      %v2266 = vsel %vm2265, %v2258, %v2262
      %v2267 = vand.u32 2147483647, %v1592
      %vm2268 = vcmp.eq.f32.partialorder %v2267, 8.507059e+37
      %v2269 = vand.u32 %v1592, 2147483648
      %v2270 = vor.u32 1.1754944e-38, %v2269
      %v2271 = vsel %vm2268, %v2270, %v2266
      %v2272 = vmul.f32 1.0, %v2271
      %v2273 = vrcp.pop %v1593
      %v2274 = vmul.f32 %v1593, %v2273
      %v2275 = vsub.f32 1.0, %v2274
      %v2276 = vmul.f32 %v2273, %v2275
      %v2277 = vadd.f32 %v2273, %v2276
      %vm2278 = vweird.f32 %v1593
      %vm2279 = vweird.f32 %v2273
      %vm2280 = vmor %vm2278, %vm2279
      %v2281 = vsel %vm2280, %v2273, %v2277
      %v2282 = vand.u32 2147483647, %v1593
      %vm2283 = vcmp.eq.f32.partialorder %v2282, 8.507059e+37
      %v2284 = vand.u32 %v1593, 2147483648
      %v2285 = vor.u32 1.1754944e-38, %v2284
      %v2286 = vsel %vm2283, %v2285, %v2281
      %v2287 = vmul.f32 1.0, %v2286
      %v2288 = vrcp.pop %v1594
      %v2289 = vmul.f32 %v1594, %v2288
      %v2290 = vsub.f32 1.0, %v2289
      %v2291 = vmul.f32 %v2288, %v2290
      %v2292 = vadd.f32 %v2288, %v2291
      %vm2293 = vweird.f32 %v1594
      %vm2294 = vweird.f32 %v2288
      %vm2295 = vmor %vm2293, %vm2294
      %v2296 = vsel %vm2295, %v2288, %v2292
      %v2297 = vand.u32 2147483647, %v1594
      %vm2298 = vcmp.eq.f32.partialorder %v2297, 8.507059e+37
      %v2299 = vand.u32 %v1594, 2147483648
      %v2300 = vor.u32 1.1754944e-38, %v2299
      %v2301 = vsel %vm2298, %v2300, %v2296
      %v2302 = vmul.f32 1.0, %v2301
      %v2303 = vrcp.pop %v1595
      %v2304 = vmul.f32 %v1595, %v2303
      %v2305 = vsub.f32 1.0, %v2304
      %v2306 = vmul.f32 %v2303, %v2305
      %v2307 = vadd.f32 %v2303, %v2306
      %vm2308 = vweird.f32 %v1595
      %vm2309 = vweird.f32 %v2303
      %vm2310 = vmor %vm2308, %vm2309
      %v2311 = vsel %vm2310, %v2303, %v2307
      %v2312 = vand.u32 2147483647, %v1595
      %vm2313 = vcmp.eq.f32.partialorder %v2312, 8.507059e+37
      %v2314 = vand.u32 %v1595, 2147483648
      %v2315 = vor.u32 1.1754944e-38, %v2314
      %v2316 = vsel %vm2313, %v2315, %v2311
      %v2317 = vmul.f32 1.0, %v2316
      %v2318 = vrcp.pop %v1596
      %v2319 = vmul.f32 %v1596, %v2318
      %v2320 = vsub.f32 1.0, %v2319
      %v2321 = vmul.f32 %v2318, %v2320
      %v2322 = vadd.f32 %v2318, %v2321
      %vm2323 = vweird.f32 %v1596
      %vm2324 = vweird.f32 %v2318
      %vm2325 = vmor %vm2323, %vm2324
      %v2326 = vsel %vm2325, %v2318, %v2322
      %v2327 = vand.u32 2147483647, %v1596
      %vm2328 = vcmp.eq.f32.partialorder %v2327, 8.507059e+37
      %v2329 = vand.u32 %v1596, 2147483648
      %v2330 = vor.u32 1.1754944e-38, %v2329
      %v2331 = vsel %vm2328, %v2330, %v2326
      %v2332 = vmul.f32 1.0, %v2331
      %v2333 = vrcp.pop %v1597
      %v2334 = vmul.f32 %v1597, %v2333
      %v2335 = vsub.f32 1.0, %v2334
      %v2336 = vmul.f32 %v2333, %v2335
      %v2337 = vadd.f32 %v2333, %v2336
      %vm2338 = vweird.f32 %v1597
      %vm2339 = vweird.f32 %v2333
      %vm2340 = vmor %vm2338, %vm2339
      %v2341 = vsel %vm2340, %v2333, %v2337
      %v2342 = vand.u32 2147483647, %v1597
      %vm2343 = vcmp.eq.f32.partialorder %v2342, 8.507059e+37
      %v2344 = vand.u32 %v1597, 2147483648
      %v2345 = vor.u32 1.1754944e-38, %v2344
      %v2346 = vsel %vm2343, %v2345, %v2341
      %v2347 = vmul.f32 1.0, %v2346
      %v2348 = vrcp.pop %v1598
      %v2349 = vmul.f32 %v1598, %v2348
      %v2350 = vsub.f32 1.0, %v2349
      %v2351 = vmul.f32 %v2348, %v2350
      %v2352 = vadd.f32 %v2348, %v2351
      %vm2353 = vweird.f32 %v1598
      %vm2354 = vweird.f32 %v2348
      %vm2355 = vmor %vm2353, %vm2354
      %v2356 = vsel %vm2355, %v2348, %v2352
      %v2357 = vand.u32 2147483647, %v1598
      %vm2358 = vcmp.eq.f32.partialorder %v2357, 8.507059e+37
      %v2359 = vand.u32 %v1598, 2147483648
      %v2360 = vor.u32 1.1754944e-38, %v2359
      %v2361 = vsel %vm2358, %v2360, %v2356
      %v2362 = vmul.f32 1.0, %v2361
      %v2363 = vrcp.pop %v1599
      %v2364 = vmul.f32 %v1599, %v2363
      %v2365 = vsub.f32 1.0, %v2364
      %v2366 = vmul.f32 %v2363, %v2365
      %v2367 = vadd.f32 %v2363, %v2366
      %vm2368 = vweird.f32 %v1599
      %vm2369 = vweird.f32 %v2363
      %vm2370 = vmor %vm2368, %vm2369
      %v2371 = vsel %vm2370, %v2363, %v2367
      %v2372 = vand.u32 2147483647, %v1599
      %vm2373 = vcmp.eq.f32.partialorder %v2372, 8.507059e+37
      %v2374 = vand.u32 %v1599, 2147483648
      %v2375 = vor.u32 1.1754944e-38, %v2374
      %v2376 = vsel %vm2373, %v2375, %v2371
      %v2377 = vmul.f32 1.0, %v2376
      %v2378 = vrcp.pop %v1600
      %v2379 = vmul.f32 %v1600, %v2378
      %v2380 = vsub.f32 1.0, %v2379
      %v2381 = vmul.f32 %v2378, %v2380
      %v2382 = vadd.f32 %v2378, %v2381
      %vm2383 = vweird.f32 %v1600
      %vm2384 = vweird.f32 %v2378
      %vm2385 = vmor %vm2383, %vm2384
      %v2386 = vsel %vm2385, %v2378, %v2382
      %v2387 = vand.u32 2147483647, %v1600
      %vm2388 = vcmp.eq.f32.partialorder %v2387, 8.507059e+37
      %v2389 = vand.u32 %v1600, 2147483648
      %v2390 = vor.u32 1.1754944e-38, %v2389
      %v2391 = vsel %vm2388, %v2390, %v2386
      %v2392 = vmul.f32 1.0, %v2391
      %v2393 = vrcp.pop %v1601
      %v2394 = vmul.f32 %v1601, %v2393
      %v2395 = vsub.f32 1.0, %v2394
      %v2396 = vmul.f32 %v2393, %v2395
      %v2397 = vadd.f32 %v2393, %v2396
      %vm2398 = vweird.f32 %v1601
      %vm2399 = vweird.f32 %v2393
      %vm2400 = vmor %vm2398, %vm2399
      %v2401 = vsel %vm2400, %v2393, %v2397
      %v2402 = vand.u32 2147483647, %v1601
      %vm2403 = vcmp.eq.f32.partialorder %v2402, 8.507059e+37
      %v2404 = vand.u32 %v1601, 2147483648
      %v2405 = vor.u32 1.1754944e-38, %v2404
      %v2406 = vsel %vm2403, %v2405, %v2401
      %v2407 = vmul.f32 1.0, %v2406
      %v2408 = vrcp.pop %v1602
      %v2409 = vmul.f32 %v1602, %v2408
      %v2410 = vsub.f32 1.0, %v2409
      %v2411 = vmul.f32 %v2408, %v2410
      %v2412 = vadd.f32 %v2408, %v2411
      %vm2413 = vweird.f32 %v1602
      %vm2414 = vweird.f32 %v2408
      %vm2415 = vmor %vm2413, %vm2414
      %v2416 = vsel %vm2415, %v2408, %v2412
      %v2417 = vand.u32 2147483647, %v1602
      %vm2418 = vcmp.eq.f32.partialorder %v2417, 8.507059e+37
      %v2419 = vand.u32 %v1602, 2147483648
      %v2420 = vor.u32 1.1754944e-38, %v2419
      %v2421 = vsel %vm2418, %v2420, %v2416
      %v2422 = vmul.f32 1.0, %v2421
      %v2423 = vrcp.pop %v1603
      %v2424 = vmul.f32 %v1603, %v2423
      %v2425 = vsub.f32 1.0, %v2424
      %v2426 = vmul.f32 %v2423, %v2425
      %v2427 = vadd.f32 %v2423, %v2426
      %vm2428 = vweird.f32 %v1603
      %vm2429 = vweird.f32 %v2423
      %vm2430 = vmor %vm2428, %vm2429
      %v2431 = vsel %vm2430, %v2423, %v2427
      %v2432 = vand.u32 2147483647, %v1603
      %vm2433 = vcmp.eq.f32.partialorder %v2432, 8.507059e+37
      %v2434 = vand.u32 %v1603, 2147483648
      %v2435 = vor.u32 1.1754944e-38, %v2434
      %v2436 = vsel %vm2433, %v2435, %v2431
      %v2437 = vmul.f32 1.0, %v2436
      %v2438 = vrcp.pop %v1604
      %v2439 = vmul.f32 %v1604, %v2438
      %v2440 = vsub.f32 1.0, %v2439
      %v2441 = vmul.f32 %v2438, %v2440
      %v2442 = vadd.f32 %v2438, %v2441
      %vm2443 = vweird.f32 %v1604
      %vm2444 = vweird.f32 %v2438
      %vm2445 = vmor %vm2443, %vm2444
      %v2446 = vsel %vm2445, %v2438, %v2442
      %v2447 = vand.u32 2147483647, %v1604
      %vm2448 = vcmp.eq.f32.partialorder %v2447, 8.507059e+37
      %v2449 = vand.u32 %v1604, 2147483648
      %v2450 = vor.u32 1.1754944e-38, %v2449
      %v2451 = vsel %vm2448, %v2450, %v2446
      %v2452 = vmul.f32 1.0, %v2451
      %v2453 = vrcp.pop %v1605
      %v2454 = vmul.f32 %v1605, %v2453
      %v2455 = vsub.f32 1.0, %v2454
      %v2456 = vmul.f32 %v2453, %v2455
      %v2457 = vadd.f32 %v2453, %v2456
      %vm2458 = vweird.f32 %v1605
      %vm2459 = vweird.f32 %v2453
      %vm2460 = vmor %vm2458, %vm2459
      %v2461 = vsel %vm2460, %v2453, %v2457
      %v2462 = vand.u32 2147483647, %v1605
      %vm2463 = vcmp.eq.f32.partialorder %v2462, 8.507059e+37
      %v2464 = vand.u32 %v1605, 2147483648
      %v2465 = vor.u32 1.1754944e-38, %v2464
      %v2466 = vsel %vm2463, %v2465, %v2461
      %v2467 = vmul.f32 1.0, %v2466
      %v2468 = vrcp.pop %v1606
      %v2469 = vmul.f32 %v1606, %v2468
      %v2470 = vsub.f32 1.0, %v2469
      %v2471 = vmul.f32 %v2468, %v2470
      %v2472 = vadd.f32 %v2468, %v2471
      %vm2473 = vweird.f32 %v1606
      %vm2474 = vweird.f32 %v2468
      %vm2475 = vmor %vm2473, %vm2474
      %v2476 = vsel %vm2475, %v2468, %v2472
      %v2477 = vand.u32 2147483647, %v1606
      %vm2478 = vcmp.eq.f32.partialorder %v2477, 8.507059e+37
      %v2479 = vand.u32 %v1606, 2147483648
      %v2480 = vor.u32 1.1754944e-38, %v2479
      %v2481 = vsel %vm2478, %v2480, %v2476
      %v2482 = vmul.f32 1.0, %v2481
      %v2483 = vrcp.pop %v1607
      %v2484 = vmul.f32 %v1607, %v2483
      %v2485 = vsub.f32 1.0, %v2484
      %v2486 = vmul.f32 %v2483, %v2485
      %v2487 = vadd.f32 %v2483, %v2486
      %vm2488 = vweird.f32 %v1607
      %vm2489 = vweird.f32 %v2483
      %vm2490 = vmor %vm2488, %vm2489
      %v2491 = vsel %vm2490, %v2483, %v2487
      %v2492 = vand.u32 2147483647, %v1607
      %vm2493 = vcmp.eq.f32.partialorder %v2492, 8.507059e+37
      %v2494 = vand.u32 %v1607, 2147483648
      %v2495 = vor.u32 1.1754944e-38, %v2494
      %v2496 = vsel %vm2493, %v2495, %v2491
      %v2497 = vmul.f32 1.0, %v2496
      %v2498 = vrcp.pop %v1608
      %v2499 = vmul.f32 %v1608, %v2498
      %v2500 = vsub.f32 1.0, %v2499
      %v2501 = vmul.f32 %v2498, %v2500
      %v2502 = vadd.f32 %v2498, %v2501
      %vm2503 = vweird.f32 %v1608
      %vm2504 = vweird.f32 %v2498
      %vm2505 = vmor %vm2503, %vm2504
      %v2506 = vsel %vm2505, %v2498, %v2502
      %v2507 = vand.u32 2147483647, %v1608
      %vm2508 = vcmp.eq.f32.partialorder %v2507, 8.507059e+37
      %v2509 = vand.u32 %v1608, 2147483648
      %v2510 = vor.u32 1.1754944e-38, %v2509
      %v2511 = vsel %vm2508, %v2510, %v2506
      %v2512 = vmul.f32 1.0, %v2511
      %v2513 = vrcp.pop %v1609
      %v2514 = vmul.f32 %v1609, %v2513
      %v2515 = vsub.f32 1.0, %v2514
      %v2516 = vmul.f32 %v2513, %v2515
      %v2517 = vadd.f32 %v2513, %v2516
      %vm2518 = vweird.f32 %v1609
      %vm2519 = vweird.f32 %v2513
      %vm2520 = vmor %vm2518, %vm2519
      %v2521 = vsel %vm2520, %v2513, %v2517
      %v2522 = vand.u32 2147483647, %v1609
      %vm2523 = vcmp.eq.f32.partialorder %v2522, 8.507059e+37
      %v2524 = vand.u32 %v1609, 2147483648
      %v2525 = vor.u32 1.1754944e-38, %v2524
      %v2526 = vsel %vm2523, %v2525, %v2521
      %v2527 = vmul.f32 1.0, %v2526
      %v2528 = vrcp.pop %v1610
      %v2529 = vmul.f32 %v1610, %v2528
      %v2530 = vsub.f32 1.0, %v2529
      %v2531 = vmul.f32 %v2528, %v2530
      %v2532 = vadd.f32 %v2528, %v2531
      %vm2533 = vweird.f32 %v1610
      %vm2534 = vweird.f32 %v2528
      %vm2535 = vmor %vm2533, %vm2534
      %v2536 = vsel %vm2535, %v2528, %v2532
      %v2537 = vand.u32 2147483647, %v1610
      %vm2538 = vcmp.eq.f32.partialorder %v2537, 8.507059e+37
      %v2539 = vand.u32 %v1610, 2147483648
      %v2540 = vor.u32 1.1754944e-38, %v2539
      %v2541 = vsel %vm2538, %v2540, %v2536
      %v2542 = vmul.f32 1.0, %v2541
      %v2543 = vrcp.pop %v1611
      %v2544 = vmul.f32 %v1611, %v2543
      %v2545 = vsub.f32 1.0, %v2544
      %v2546 = vmul.f32 %v2543, %v2545
      %v2547 = vadd.f32 %v2543, %v2546
      %vm2548 = vweird.f32 %v1611
      %vm2549 = vweird.f32 %v2543
      %vm2550 = vmor %vm2548, %vm2549
      %v2551 = vsel %vm2550, %v2543, %v2547
      %v2552 = vand.u32 2147483647, %v1611
      %vm2553 = vcmp.eq.f32.partialorder %v2552, 8.507059e+37
      %v2554 = vand.u32 %v1611, 2147483648
      %v2555 = vor.u32 1.1754944e-38, %v2554
      %v2556 = vsel %vm2553, %v2555, %v2551
      %v2557 = vmul.f32 1.0, %v2556
      %v2558 = vrcp.pop %v1612
      %v2559 = vmul.f32 %v1612, %v2558
      %v2560 = vsub.f32 1.0, %v2559
      %v2561 = vmul.f32 %v2558, %v2560
      %v2562 = vadd.f32 %v2558, %v2561
      %vm2563 = vweird.f32 %v1612
      %vm2564 = vweird.f32 %v2558
      %vm2565 = vmor %vm2563, %vm2564
      %v2566 = vsel %vm2565, %v2558, %v2562
      %v2567 = vand.u32 2147483647, %v1612
      %vm2568 = vcmp.eq.f32.partialorder %v2567, 8.507059e+37
      %v2569 = vand.u32 %v1612, 2147483648
      %v2570 = vor.u32 1.1754944e-38, %v2569
      %v2571 = vsel %vm2568, %v2570, %v2566
      %v2572 = vmul.f32 1.0, %v2571
      %vm2573 = vcmask 89088
      %2574 = vst.msk [vmem:[%s213] sm:$0xff] %vm2573, %v1627
      %2575 = vst.msk [vmem:[%s213 + $0x8] sm:$0xff] %vm2573, %v1642
      %2576 = vst.msk [vmem:[%s213 + $0x10] sm:$0xff] %vm2573, %v1657
      %2577 = vst.msk [vmem:[%s213 + $0x18] sm:$0xff] %vm2573, %v1672
      %2578 = vst.msk [vmem:[%s213 + $0x20] sm:$0xff] %vm2573, %v1687
      %2579 = vst.msk [vmem:[%s213 + $0x28] sm:$0xff] %vm2573, %v1702
      %2580 = vst.msk [vmem:[%s213 + $0x30] sm:$0xff] %vm2573, %v1717
      %2581 = vst.msk [vmem:[%s213 + $0x38] sm:$0xff] %vm2573, %v1732
      %2582 = vst.msk [vmem:[%s213 + $0x40] sm:$0xff] %vm2573, %v1747
      %2583 = vst.msk [vmem:[%s213 + $0x48] sm:$0xff] %vm2573, %v1762
      %2584 = vst.msk [vmem:[%s213 + $0x50] sm:$0xff] %vm2573, %v1777
      %2585 = vst.msk [vmem:[%s213 + $0x58] sm:$0xff] %vm2573, %v1792
      %2586 = vst.msk [vmem:[%s213 + $0x60] sm:$0xff] %vm2573, %v1807
      %2587 = vst.msk [vmem:[%s213 + $0x68] sm:$0xff] %vm2573, %v1822
      %2588 = vst.msk [vmem:[%s213 + $0x70] sm:$0xff] %vm2573, %v1837
      %2589 = vst.msk [vmem:[%s213 + $0x78] sm:$0xff] %vm2573, %v1852
      %2590 = vst.msk [vmem:[%s213 + $0x80] sm:$0xff] %vm2573, %v1867
      %2591 = vst.msk [vmem:[%s213 + $0x88] sm:$0xff] %vm2573, %v1882
      %2592 = vst.msk [vmem:[%s213 + $0x90] sm:$0xff] %vm2573, %v1897
      %2593 = vst.msk [vmem:[%s213 + $0x98] sm:$0xff] %vm2573, %v1912
      %2594 = vst.msk [vmem:[%s213 + $0xa0] sm:$0xff] %vm2573, %v1927
      %2595 = vst.msk [vmem:[%s213 + $0xa8] sm:$0xff] %vm2573, %v1942
      %2596 = vst.msk [vmem:[%s213 + $0xb0] sm:$0xff] %vm2573, %v1957
      %2597 = vst.msk [vmem:[%s213 + $0xb8] sm:$0xff] %vm2573, %v1972
      %2598 = vst.msk [vmem:[%s213 + $0xc0] sm:$0xff] %vm2573, %v1987
      %2599 = vst.msk [vmem:[%s213 + $0xc8] sm:$0xff] %vm2573, %v2002
      %2600 = vst.msk [vmem:[%s213 + $0xd0] sm:$0xff] %vm2573, %v2017
      %2601 = vst.msk [vmem:[%s213 + $0xd8] sm:$0xff] %vm2573, %v2032
      %2602 = vst.msk [vmem:[%s213 + $0xe0] sm:$0xff] %vm2573, %v2047
      %2603 = vst.msk [vmem:[%s213 + $0xe8] sm:$0xff] %vm2573, %v2062
      %2604 = vst.msk [vmem:[%s213 + $0xf0] sm:$0xff] %vm2573, %v2077
      %2605 = vst.msk [vmem:[%s213 + $0xf8] sm:$0xff] %vm2573, %v2092
      %2606 = vst.msk [vmem:[%s213 + $0x100] sm:$0xff] %vm2573, %v2107
      %2607 = vst.msk [vmem:[%s213 + $0x108] sm:$0xff] %vm2573, %v2122
      %2608 = vst.msk [vmem:[%s213 + $0x110] sm:$0xff] %vm2573, %v2137
      %2609 = vst.msk [vmem:[%s213 + $0x118] sm:$0xff] %vm2573, %v2152
      %2610 = vst.msk [vmem:[%s213 + $0x120] sm:$0xff] %vm2573, %v2167
      %2611 = vst.msk [vmem:[%s213 + $0x128] sm:$0xff] %vm2573, %v2182
      %2612 = vst.msk [vmem:[%s213 + $0x130] sm:$0xff] %vm2573, %v2197
      %2613 = vst.msk [vmem:[%s213 + $0x138] sm:$0xff] %vm2573, %v2212
      %2614 = vst.msk [vmem:[%s213 + $0x140] sm:$0xff] %vm2573, %v2227
      %2615 = vst.msk [vmem:[%s213 + $0x148] sm:$0xff] %vm2573, %v2242
      %2616 = vst.msk [vmem:[%s213 + $0x150] sm:$0xff] %vm2573, %v2257
      %2617 = vst.msk [vmem:[%s213 + $0x158] sm:$0xff] %vm2573, %v2272
      %2618 = vst.msk [vmem:[%s213 + $0x160] sm:$0xff] %vm2573, %v2287
      %2619 = vst.msk [vmem:[%s213 + $0x168] sm:$0xff] %vm2573, %v2302
      %2620 = vst.msk [vmem:[%s213 + $0x170] sm:$0xff] %vm2573, %v2317
      %2621 = vst.msk [vmem:[%s213 + $0x178] sm:$0xff] %vm2573, %v2332
      %2622 = vst.msk [vmem:[%s213 + $0x180] sm:$0xff] %vm2573, %v2347
      %2623 = vst.msk [vmem:[%s213 + $0x188] sm:$0xff] %vm2573, %v2362
      %2624 = vst.msk [vmem:[%s213 + $0x190] sm:$0xff] %vm2573, %v2377
      %2625 = vst.msk [vmem:[%s213 + $0x198] sm:$0xff] %vm2573, %v2392
      %2626 = vst.msk [vmem:[%s213 + $0x1a0] sm:$0xff] %vm2573, %v2407
      %2627 = vst.msk [vmem:[%s213 + $0x1a8] sm:$0xff] %vm2573, %v2422
      %2628 = vst.msk [vmem:[%s213 + $0x1b0] sm:$0xff] %vm2573, %v2437
      %2629 = vst.msk [vmem:[%s213 + $0x1b8] sm:$0xff] %vm2573, %v2452
      %2630 = vst.msk [vmem:[%s213 + $0x1c0] sm:$0xff] %vm2573, %v2467
      %2631 = vst.msk [vmem:[%s213 + $0x1c8] sm:$0xff] %vm2573, %v2482
      %2632 = vst.msk [vmem:[%s213 + $0x1d0] sm:$0xff] %vm2573, %v2497
      %2633 = vst.msk [vmem:[%s213 + $0x1d8] sm:$0xff] %vm2573, %v2512
      %2634 = vst.msk [vmem:[%s213 + $0x1e0] sm:$0xff] %vm2573, %v2527
      %2635 = vst.msk [vmem:[%s213 + $0x1e8] sm:$0xff] %vm2573, %v2542
      %2636 = vst.msk [vmem:[%s213 + $0x1f0] sm:$0xff] %vm2573, %v2557
      %2637 = vst.msk [vmem:[%s213 + $0x1f8] sm:$0xff] %vm2573, %v2572
      %s2638 = smul.u32 64, %s16
      %p2639 = scmp.lt.s32.totalorder %s2638, 127
      %s2640 = scalar_select %p2639, %s2638, 127
      %s2641 = smul.addr %s2640, 4
      %s2642 = scalar_lea.vmem %s3, %s2641
      %s2643 = smul.u32 64, %s16
      %p2644 = scmp.lt.s32.totalorder %s2643, 127
      %s2645 = scalar_select %p2644, %s2643, 127
      %s2646 = smul.addr %s2645, 8
      %s2647 = scalar_lea.vmem %s4, %s2646
      // Predicated region
      $region33: #{detection_model_forward.2} parent=31 // pred_check
        %p2648 = pneg %p102
      $region34: #{detection_model_forward.2} parent=31 // pred_check_branch
        %2650 = sbr.rel (%p2648) target = $region36
      $region35: #{detection_model_forward.2} parent=31 // pred_region
        %s2651 = smul.u32 64, %s16
      $region36: #{detection_model_forward.2} parent=31 // pred_fallthru
        _
      // Predicated region
      $region37: #{detection_model_forward.2} parent=31 // pred_check
        %p2652 = pneg %p128
      $region38: #{detection_model_forward.2} parent=31 // pred_check_branch
        %2654 = sbr.rel (%p2652) target = $region40
      $region39: #{detection_model_forward.2} parent=31 // pred_region
        %s2655 = smul.u32 64, %s16
      $region40: #{detection_model_forward.2} parent=31 // pred_fallthru
        _
    $region32: #{detection_model_forward.2} parent=5 // pred_fallthru
      _
    %p2656 = scmp.le.s32.totalorder 2, %s11
    // Predicated region
    $region41: #{detection_model_forward.2} parent=5 // pred_check
      %p2657 = pneg %p2656
    $region42: #{detection_model_forward.2} parent=5 // pred_check_branch
      %2659 = sbr.rel (%p2657) target = $region44
    $region43: #{detection_model_forward.2} parent=5 // pred_region
      %s2660 = ssub.s32 %s11, 2
      // Predicated region
      $region45: #{detection_model_forward.2} parent=43 // pred_check
        %p2661 = pneg %p108
      $region46: #{detection_model_forward.2} parent=43 // pred_check_branch
        %2663 = sbr.rel (%p2661) target = $region48
      $region47: #{detection_model_forward.2} parent=43 // pred_region
        %s2664 = smul.u32 64, %s17
        %p2665 = scmp.lt.s32.totalorder %s2664, 127
        %s2666 = scalar_select %p2665, %s2664, 127
        %s2667 = smul.addr %s2666, 4
        %s2668 = scalar_lea.vmem %s3, %s2667
      $region48: #{detection_model_forward.2} parent=43 // pred_fallthru
        _
      // Predicated region
      $region49: #{detection_model_forward.2} parent=43 // pred_check
        %p2669 = pneg %p134
      $region50: #{detection_model_forward.2} parent=43 // pred_check_branch
        %2671 = sbr.rel (%p2669) target = $region52
      $region51: #{detection_model_forward.2} parent=43 // pred_region
        %s2672 = smul.u32 64, %s17
        %p2673 = scmp.lt.s32.totalorder %s2672, 127
        %s2674 = scalar_select %p2673, %s2672, 127
        %s2675 = smul.addr %s2674, 8
        %s2676 = scalar_lea.vmem %s4, %s2675
      $region52: #{detection_model_forward.2} parent=43 // pred_fallthru
        _
    $region44: #{detection_model_forward.2} parent=5 // pred_fallthru
      _
  $region6: #{detection_model_forward.2} parent=0 // loop_footer
    %s15 = sadd.s32 1, %s11
  $region7: #{detection_model_forward.2} parent=0 // loop_footer_branch
    %10 = sbr.rel target = $region3
  $region8: #{detection_model_forward.2} parent=0 // loop_exit
    _

</llo_original>
